<compile_context>
chip_gen: v6e
topology: v6e:2x2x1
jax: 0.10.0
libtpu: 0.0.40
codegen_flags: <defaults>
</compile_context>

<pallas_src>
import jax
import jax.numpy as jnp
from jax.experimental import pallas as pl
from jax.experimental.pallas import tpu as pltpu

FPAD = 128  # padded feature width (one full vreg lane group)


def _make_gcn_kernel(layer_num: int, tm: int, num_bufs: int):
    """Builds the fused kernel body for a given number of GCN layers."""
    L = layer_num
    n_in = 3 * L + 1  # adj, x, W_0..W_{L-1}, W_ss, masks_main, masks_ss

    def kernel(*refs):
        in_refs = refs[:n_in]
        out_x_ref = refs[n_in]
        out_ss_ref = refs[n_in + 1]
        scratch = refs[n_in + 2:]
        hm_bufs = scratch[:num_bufs]          # main-branch activations (bf16)
        hs_bufs = scratch[num_bufs:]          # ss-branch activations (bf16)

        adj_ref, x_ref = in_refs[0], in_refs[1]
        w_refs = in_refs[2:2 + L]
        wss_ref = in_refs[2 + L]
        mm_refs = in_refs[3 + L:3 + L + (L - 1)]
        ms_refs = in_refs[3 + L + (L - 1):]

        bf16 = jnp.bfloat16
        f32 = jnp.float32

        s_idx = pl.program_id(0)              # GCN layer / stage (slow axis)
        i_idx = pl.program_id(1)              # row block        (fast axis)
        row = pl.multiple_of(i_idx * tm, tm)

        adj_blk = adj_ref[...]                # (tm, N) bf16, freshly DMA'd

        # ---- stage 0: shared prefix of both branches, computed once --------
        @pl.when(s_idx == 0)
        def _stage0():
            t = jnp.dot(adj_blk, x_ref[...], preferred_element_type=f32)
            t = jnp.dot(t.astype(bf16), w_refs[0][...],
                        preferred_element_type=f32)
            t = jnp.maximum(t, 0.0)                               # ReLU (f32)
            hm_bufs[0][pl.ds(row, tm), :] = (t * mm_refs[0][...]).astype(bf16)
            hs_bufs[0][pl.ds(row, tm), :] = (t * ms_refs[0][...]).astype(bf16)
            # Keep the (revisited) output blocks defined before the last stage.
            out_x_ref[...] = jnp.zeros_like(out_x_ref)
            out_ss_ref[...] = jnp.zeros_like(out_ss_ref)

        # ---- middle stages (only exercised when layer_num > 2) --------------
        for stage in range(1, L - 1):
            src = (stage - 1) % num_bufs
            dst = stage % num_bufs

            @pl.when(s_idx == stage)
            def _mid(stage=stage, src=src, dst=dst):
                am = jnp.dot(adj_blk, hm_bufs[src][...],
                             preferred_element_type=f32)
                am = jnp.dot(am.astype(bf16), w_refs[stage][...],
                             preferred_element_type=f32)
                am = jnp.maximum(am, 0.0)
                hm_bufs[dst][pl.ds(row, tm), :] = (
                    am * mm_refs[stage][...]).astype(bf16)

                sa = jnp.dot(adj_blk, hs_bufs[src][...],
                             preferred_element_type=f32)
                sa = jnp.dot(sa.astype(bf16), w_refs[stage][...],
                             preferred_element_type=f32)
                sa = jnp.maximum(sa, 0.0)
                hs_bufs[dst][pl.ds(row, tm), :] = (
                    sa * ms_refs[stage][...]).astype(bf16)

                out_x_ref[...] = jnp.zeros_like(out_x_ref)
                out_ss_ref[...] = jnp.zeros_like(out_ss_ref)

        # ---- last stage: final spmm + W_{L-1} (main) / W_ss (ss) -------------
        last_src = (L - 2) % num_bufs

        @pl.when(s_idx == L - 1)
        def _last():
            am = jnp.dot(adj_blk, hm_bufs[last_src][...],
                         preferred_element_type=f32)
            out_x_ref[...] = jnp.dot(am.astype(bf16), w_refs[L - 1][...],
                                     preferred_element_type=f32)
            sa = jnp.dot(adj_blk, hs_bufs[last_src][...],
                         preferred_element_type=f32)
            out_ss_ref[...] = jnp.dot(sa.astype(bf16), wss_ref[...],
                                      preferred_element_type=f32)

    return kernel


def _pad2d(a, rows, cols):
    return jnp.pad(a, ((0, rows - a.shape[0]), (0, cols - a.shape[1])))


def gcn_multitask_forward(x, adj, weights_t, w_ss_t, masks_main, masks_ss,
                          block_rows=128):
    """Fused forward (val_test=False). weights_t / w_ss_t are already (in, out)."""
    L = len(weights_t)
    assert L >= 2
    N = x.shape[0]
    d_out = weights_t[-1].shape[1]
    ss_dim = w_ss_t.shape[1]

    tm = block_rows if (N % block_rows == 0) else N
    assert N % tm == 0 and tm % 8 == 0
    nb = N // tm
    num_bufs = 1 if L == 2 else 2

    # --- wrapper-side layout prep: bf16 MXU operands, 128-lane feature pad ---
    adj_b = adj.astype(jnp.bfloat16)
    x_p = _pad2d(x, N, FPAD).astype(jnp.bfloat16)
    w_p = [_pad2d(w, FPAD, FPAD).astype(jnp.bfloat16) for w in weights_t]
    wss_p = _pad2d(w_ss_t, FPAD, FPAD).astype(jnp.bfloat16)
    mm_p = [_pad2d(m, N, FPAD).astype(jnp.float32) for m in masks_main]
    ms_p = [_pad2d(m, N, FPAD).astype(jnp.float32) for m in masks_ss]

    adj_spec = pl.BlockSpec((tm, N), lambda s, i: (i, 0))        # streamed
    resident = lambda shape: pl.BlockSpec(shape, lambda s, i: (0, 0))
    blockrow_spec = pl.BlockSpec((tm, FPAD), lambda s, i: (i, 0))

    in_specs = ([adj_spec, resident((N, FPAD))]
                + [resident((FPAD, FPAD))] * (L + 1)
                + [blockrow_spec] * (2 * (L - 1)))
    out_specs = [blockrow_spec, blockrow_spec]
    out_shape = (jax.ShapeDtypeStruct((N, FPAD), jnp.float32),
                 jax.ShapeDtypeStruct((N, FPAD), jnp.float32))
    scratch_shapes = [pltpu.VMEM((N, FPAD), jnp.bfloat16)] * (2 * num_bufs)

    # --- advisory cost estimate + explicit VMEM budget ------------------------
    spmm_flops = 2 * N * N * FPAD
    lin_flops = 2 * N * FPAD * FPAD
    flops = (1 + 2 * (L - 1)) * (spmm_flops + lin_flops)
    bytes_accessed = (adj_b.size * 2 * L + x_p.size * 2
                      + sum(w.size * 2 for w in w_p) + wss_p.size * 2
                      + sum(m.size * 4 for m in mm_p + ms_p) * L
                      + 2 * N * FPAD * 4 * L)
    cost = pl.CostEstimate(flops=flops, transcendentals=0,
                           bytes_accessed=bytes_accessed)

    vmem_bytes = (2 * tm * N * 2                     # adj slab (double-buffered)
                  + 2 * N * FPAD * 2                 # resident x
                  + 2 * (L + 1) * FPAD * FPAD * 2    # weights
                  + 2 * 2 * (L - 1) * tm * FPAD * 4  # mask blocks
                  + 2 * 2 * tm * FPAD * 4            # output blocks
                  + 2 * num_bufs * N * FPAD * 2)     # activation scratch
    vmem_limit = int(min(max(2 * vmem_bytes, 16 * 1024 * 1024),
                         64 * 1024 * 1024))

    fn = pl.pallas_call(
        _make_gcn_kernel(L, tm, num_bufs),
        grid=(L, nb),
        in_specs=in_specs,
        out_specs=out_specs,
        out_shape=out_shape,
        scratch_shapes=scratch_shapes,
        cost_estimate=cost,
        compiler_params=pltpu.CompilerParams(
            # Stage axis is a true sequential dependency. The row-block axis is
            # also kept "arbitrary": later stages read scratch rows written by
            # *other* row blocks of the previous stage, and megacore "parallel"
            # would give each TensorCore its own scratch copy. (To exploit
            # v7x's 2 TCs, split stages into separate pallas_calls with a
            # parallel row axis.)
            dimension_semantics=("arbitrary", "arbitrary"),
            vmem_limit_bytes=vmem_limit),
    )

    out_x_p, out_ss_p = fn(adj_b, x_p, *w_p, wss_p, *mm_p, *ms_p)
    return out_x_p[:, :d_out], out_ss_p[:, :ss_dim]


def reference_forward(x, adj, weights_t, w_ss_t, masks_main, masks_ss):
    """Pure-f32 JAX reference mirroring the PyTorch forward (val_test=False)."""
    L = len(weights_t)
    h = x
    for ln in range(L):
        h = adj @ h
        h = h @ weights_t[ln]
        if ln == L - 1:
            break
        h = jnp.maximum(h, 0.0)
        h = h * masks_main[ln]
    s = x
    for ln in range(L):
        s = adj @ s
        if ln == L - 1:
            break
        s = s @ weights_t[ln]
        s = jnp.maximum(s, 0.0)
        s = s * masks_ss[ln]
    s = s @ w_ss_t
    return h, s


def reference_forward_bf16(x, adj, weights_t, w_ss_t, masks_main, masks_ss):
    """Reference emulating the kernel's bf16-operand / f32-accumulate math."""
    L = len(weights_t)
    bf16, f32 = jnp.bfloat16, jnp.float32
    mm = lambda a, b: jnp.dot(a.astype(bf16), b.astype(bf16),
                              preferred_element_type=f32)
    t = jnp.maximum(mm(mm(adj, x), weights_t[0]), 0.0)
    h = (t * masks_main[0]).astype(bf16)
    s = (t * masks_ss[0]).astype(bf16)
    for ln in range(1, L - 1):
        th = jnp.maximum(mm(mm(adj, h), weights_t[ln]), 0.0)
        ts = jnp.maximum(mm(mm(adj, s), weights_t[ln]), 0.0)
        h = (th * masks_main[ln]).astype(bf16)
        s = (ts * masks_ss[ln]).astype(bf16)
    out_x = mm(mm(adj, h), weights_t[L - 1])
    out_ss = mm(mm(adj, s), w_ss_t)
    return out_x, out_ss


if __name__ == "__main__":
    # Module config (synthetic, deterministic init)
    embedding_dim = [32, 64, 16]   # -> layer_num = 2
    ss_dim = 8
    N = 256                        # number of graph nodes (2 row blocks of 128)
    layer_num = len(embedding_dim) - 1

    key = jax.random.PRNGKey(0)
    keys = jax.random.split(key, 8)

    # Node features and dense (row-normalized) adjacency.
    x = jax.random.normal(keys[0], (N, embedding_dim[0]), dtype=jnp.float32)
    adj_raw = (jax.random.uniform(keys[1], (N, N)) < 0.1).astype(jnp.float32)
    adj_raw = adj_raw + jnp.eye(N, dtype=jnp.float32)
    adj = adj_raw / jnp.sum(adj_raw, axis=1, keepdims=True)

    # nn.Linear(in, out, bias=False) weights: torch shape (out, in); stored
    # transposed (in, out) for direct right-multiplication in the kernel.
    weights_t = []
    for ln in range(layer_num):
        w = jax.random.normal(
            keys[2 + ln], (embedding_dim[ln + 1], embedding_dim[ln]),
            dtype=jnp.float32) * 0.1
        weights_t.append(w.T)
    w_ss = jax.random.normal(
        keys[2 + layer_num], (ss_dim, embedding_dim[-2]), dtype=jnp.float32) * 0.1
    w_ss_t = w_ss.T

    # Dropout (p=0.5) masks, scaled by 1/keep_prob; independent per branch,
    # matching the two separate dropout draws in the PyTorch forward.
    masks_main, masks_ss = [], []
    mkey = keys[-1]
    for ln in range(layer_num - 1):
        mkey, k1, k2 = jax.random.split(mkey, 3)
        shape = (N, embedding_dim[ln + 1])
        masks_main.append(
            jax.random.bernoulli(k1, 0.5, shape).astype(jnp.float32) / 0.5)
        masks_ss.append(
            jax.random.bernoulli(k2, 0.5, shape).astype(jnp.float32) / 0.5)

    out_x, out_x_ss = gcn_multitask_forward(
        x, adj, weights_t, w_ss_t, masks_main, masks_ss)
    jax.block_until_ready((out_x, out_x_ss))

    # Tight check against a reference using the same precision choice
    # (bf16 MXU operands, f32 accumulation).
    emu_x, emu_ss = reference_forward_bf16(
        x, adj, weights_t, w_ss_t, masks_main, masks_ss)
    assert jnp.allclose(out_x, emu_x, atol=1e-4, rtol=1e-4)
    assert jnp.allclose(out_x_ss, emu_ss, atol=1e-4, rtol=1e-4)

    # Semantic check against the full-f32 PyTorch-mirroring reference.
    ref_x, ref_x_ss = reference_forward(
        x, adj, weights_t, w_ss_t, masks_main, masks_ss)
    assert jnp.allclose(out_x, ref_x, atol=3e-2, rtol=3e-2)
    assert jnp.allclose(out_x_ss, ref_x_ss, atol=3e-2, rtol=3e-2)

    print("KERNEL_OK")
</pallas_src>

<mosaic_0001>
module attributes {stable_mosaic.version = 11 : i64} {
  func.func @kernel(%arg0: i32, %arg1: i32, %arg2: memref<128x256xbf16, #tpu.memory_space<vmem>>, %arg3: memref<256x128xbf16, #tpu.memory_space<vmem>>, %arg4: memref<128x128xbf16, #tpu.memory_space<vmem>>, %arg5: memref<128x128xbf16, #tpu.memory_space<vmem>>, %arg6: memref<128x128xbf16, #tpu.memory_space<vmem>>, %arg7: memref<128x128xf32, #tpu.memory_space<vmem>>, %arg8: memref<128x128xf32, #tpu.memory_space<vmem>>, %arg9: memref<128x128xf32, #tpu.memory_space<vmem>>, %arg10: memref<128x128xf32, #tpu.memory_space<vmem>>, %arg11: memref<256x128xbf16, #tpu.memory_space<vmem>>, %arg12: memref<256x128xbf16, #tpu.memory_space<vmem>>) attributes {dimension_semantics = [#tpu.dimension_semantics<arbitrary>, #tpu.dimension_semantics<arbitrary>], iteration_bounds = array<i64: 2, 2>, scalar_prefetch = 0 : i64, scratch_operands = 2 : i64, tpu.core_type = #tpu.core_type<tc>, window_params = [{transform_indices = @transform_0, window_bounds = array<i64: 128, 256>}, {pipeline_mode = #tpu.pipeline_mode<synchronous>, transform_indices = @transform_1, window_bounds = array<i64: 256, 128>}, {pipeline_mode = #tpu.pipeline_mode<synchronous>, transform_indices = @transform_2, window_bounds = array<i64: 128, 128>}, {pipeline_mode = #tpu.pipeline_mode<synchronous>, transform_indices = @transform_3, window_bounds = array<i64: 128, 128>}, {pipeline_mode = #tpu.pipeline_mode<synchronous>, transform_indices = @transform_4, window_bounds = array<i64: 128, 128>}, {transform_indices = @transform_5, window_bounds = array<i64: 128, 128>}, {transform_indices = @transform_6, window_bounds = array<i64: 128, 128>}, {transform_indices = @transform_7, window_bounds = array<i64: 128, 128>}, {transform_indices = @transform_8, window_bounds = array<i64: 128, 128>}]} {
    %c128_i32 = arith.constant 128 : i32
    %0 = arith.muli %arg1, %c128_i32 : i32
    %1 = tpu.assume_multiple %0, 128 : i32
    %c0 = arith.constant 0 : index
    %c0_0 = arith.constant 0 : index
    %2 = vector.load %arg2[%c0, %c0_0] : memref<128x256xbf16, #tpu.memory_space<vmem>>, vector<128x256xbf16>
    %c0_i32 = arith.constant 0 : i32
    %3 = arith.cmpi eq, %arg0, %c0_i32 : i32
    %4 = arith.extui %3 : i1 to i32
    %c0_i32_1 = arith.constant 0 : i32
    %5 = arith.cmpi ne, %4, %c0_i32_1 : i32
    scf.if %5 {
      %c0_3 = arith.constant 0 : index
      %c0_4 = arith.constant 0 : index
      %9 = vector.load %arg3[%c0_3, %c0_4] : memref<256x128xbf16, #tpu.memory_space<vmem>>, vector<256x128xbf16>
      %cst = arith.constant dense<0.000000e+00> : vector<128x128xf32>
      %10 = tpu.matmul %2, %9, %cst {dimension_numbers = #tpu.dot_dimension_numbers<[1], [0], [0], [1], [0, 0, 1, 1], [], []>} : vector<128x256xbf16>, vector<256x128xbf16>, vector<128x128xf32> -> vector<128x128xf32>
      %11 = arith.truncf %10 : vector<128x128xf32> to vector<128x128xbf16>
      %c0_5 = arith.constant 0 : index
      %c0_6 = arith.constant 0 : index
      %12 = vector.load %arg4[%c0_5, %c0_6] : memref<128x128xbf16, #tpu.memory_space<vmem>>, vector<128x128xbf16>
      %cst_7 = arith.constant dense<0.000000e+00> : vector<128x128xf32>
      %13 = tpu.matmul %11, %12, %cst_7 {dimension_numbers = #tpu.dot_dimension_numbers<[1], [0], [0], [1], [0, 0, 1, 1], [], []>} : vector<128x128xbf16>, vector<128x128xbf16>, vector<128x128xf32> -> vector<128x128xf32>
      %cst_8 = arith.constant 0.000000e+00 : f32
      %14 = vector.broadcast %cst_8 : f32 to vector<128x128xf32>
      %15 = arith.maximumf %13, %14 : vector<128x128xf32>
      %c0_9 = arith.constant 0 : index
      %c0_10 = arith.constant 0 : index
      %16 = vector.load %arg7[%c0_9, %c0_10] : memref<128x128xf32, #tpu.memory_space<vmem>>, vector<128x128xf32>
      %17 = arith.mulf %15, %16 : vector<128x128xf32>
      %18 = arith.truncf %17 : vector<128x128xf32> to vector<128x128xbf16>
      %19 = arith.index_cast %1 : i32 to index
      %c0_11 = arith.constant 0 : index
      %20 = vector.load %arg11[%19, %c0_11] : memref<256x128xbf16, #tpu.memory_space<vmem>>, vector<128x128xbf16>
      tpu.vector_store %arg11[%19, %c0_11], %18 {strides = array<i32>} : memref<256x128xbf16, #tpu.memory_space<vmem>>, vector<128x128xbf16>,
      %c0_12 = arith.constant 0 : index
      %c0_13 = arith.constant 0 : index
      %21 = vector.load %arg8[%c0_12, %c0_13] : memref<128x128xf32, #tpu.memory_space<vmem>>, vector<128x128xf32>
      %22 = arith.mulf %15, %21 : vector<128x128xf32>
      %23 = arith.truncf %22 : vector<128x128xf32> to vector<128x128xbf16>
      %24 = arith.index_cast %1 : i32 to index
      %c0_14 = arith.constant 0 : index
      %25 = vector.load %arg12[%24, %c0_14] : memref<256x128xbf16, #tpu.memory_space<vmem>>, vector<128x128xbf16>
      tpu.vector_store %arg12[%24, %c0_14], %23 {strides = array<i32>} : memref<256x128xbf16, #tpu.memory_space<vmem>>, vector<128x128xbf16>,
      %cst_15 = arith.constant 0.000000e+00 : f32
      %26 = vector.broadcast %cst_15 : f32 to vector<128x128xf32>
      %c0_16 = arith.constant 0 : index
      %c0_17 = arith.constant 0 : index
      %27 = vector.load %arg9[%c0_16, %c0_17] : memref<128x128xf32, #tpu.memory_space<vmem>>, vector<128x128xf32>
      tpu.vector_store %arg9[%c0_16, %c0_17], %26 {strides = array<i32>} : memref<128x128xf32, #tpu.memory_space<vmem>>, vector<128x128xf32>,
      %cst_18 = arith.constant 0.000000e+00 : f32
      %28 = vector.broadcast %cst_18 : f32 to vector<128x128xf32>
      %c0_19 = arith.constant 0 : index
      %c0_20 = arith.constant 0 : index
      %29 = vector.load %arg10[%c0_19, %c0_20] : memref<128x128xf32, #tpu.memory_space<vmem>>, vector<128x128xf32>
      tpu.vector_store %arg10[%c0_19, %c0_20], %28 {strides = array<i32>} : memref<128x128xf32, #tpu.memory_space<vmem>>, vector<128x128xf32>,
    } else {
    }
    %c1_i32 = arith.constant 1 : i32
    %6 = arith.cmpi eq, %arg0, %c1_i32 : i32
    %7 = arith.extui %6 : i1 to i32
    %c0_i32_2 = arith.constant 0 : i32
    %8 = arith.cmpi ne, %7, %c0_i32_2 : i32
    scf.if %8 {
      %c0_3 = arith.constant 0 : index
      %c0_4 = arith.constant 0 : index
      %9 = vector.load %arg11[%c0_3, %c0_4] : memref<256x128xbf16, #tpu.memory_space<vmem>>, vector<256x128xbf16>
      %cst = arith.constant dense<0.000000e+00> : vector<128x128xf32>
      %10 = tpu.matmul %2, %9, %cst {dimension_numbers = #tpu.dot_dimension_numbers<[1], [0], [0], [1], [0, 0, 1, 1], [], []>} : vector<128x256xbf16>, vector<256x128xbf16>, vector<128x128xf32> -> vector<128x128xf32>
      %11 = arith.truncf %10 : vector<128x128xf32> to vector<128x128xbf16>
      %c0_5 = arith.constant 0 : index
      %c0_6 = arith.constant 0 : index
      %12 = vector.load %arg5[%c0_5, %c0_6] : memref<128x128xbf16, #tpu.memory_space<vmem>>, vector<128x128xbf16>
      %cst_7 = arith.constant dense<0.000000e+00> : vector<128x128xf32>
      %13 = tpu.matmul %11, %12, %cst_7 {dimension_numbers = #tpu.dot_dimension_numbers<[1], [0], [0], [1], [0, 0, 1, 1], [], []>} : vector<128x128xbf16>, vector<128x128xbf16>, vector<128x128xf32> -> vector<128x128xf32>
      %c0_8 = arith.constant 0 : index
      %c0_9 = arith.constant 0 : index
      %14 = vector.load %arg9[%c0_8, %c0_9] : memref<128x128xf32, #tpu.memory_space<vmem>>, vector<128x128xf32>
      tpu.vector_store %arg9[%c0_8, %c0_9], %13 {strides = array<i32>} : memref<128x128xf32, #tpu.memory_space<vmem>>, vector<128x128xf32>,
      %c0_10 = arith.constant 0 : index
      %c0_11 = arith.constant 0 : index
      %15 = vector.load %arg12[%c0_10, %c0_11] : memref<256x128xbf16, #tpu.memory_space<vmem>>, vector<256x128xbf16>
      %cst_12 = arith.constant dense<0.000000e+00> : vector<128x128xf32>
      %16 = tpu.matmul %2, %15, %cst_12 {dimension_numbers = #tpu.dot_dimension_numbers<[1], [0], [0], [1], [0, 0, 1, 1], [], []>} : vector<128x256xbf16>, vector<256x128xbf16>, vector<128x128xf32> -> vector<128x128xf32>
      %17 = arith.truncf %16 : vector<128x128xf32> to vector<128x128xbf16>
      %c0_13 = arith.constant 0 : index
      %c0_14 = arith.constant 0 : index
      %18 = vector.load %arg6[%c0_13, %c0_14] : memref<128x128xbf16, #tpu.memory_space<vmem>>, vector<128x128xbf16>
      %cst_15 = arith.constant dense<0.000000e+00> : vector<128x128xf32>
      %19 = tpu.matmul %17, %18, %cst_15 {dimension_numbers = #tpu.dot_dimension_numbers<[1], [0], [0], [1], [0, 0, 1, 1], [], []>} : vector<128x128xbf16>, vector<128x128xbf16>, vector<128x128xf32> -> vector<128x128xf32>
      %c0_16 = arith.constant 0 : index
      %c0_17 = arith.constant 0 : index
      %20 = vector.load %arg10[%c0_16, %c0_17] : memref<128x128xf32, #tpu.memory_space<vmem>>, vector<128x128xf32>
      tpu.vector_store %arg10[%c0_16, %c0_17], %19 {strides = array<i32>} : memref<128x128xf32, #tpu.memory_space<vmem>>, vector<128x128xf32>,
    } else {
    }
    return
  }
  func.func @transform_0(%arg0: i32, %arg1: i32) -> (i32, i32) {
    %c0_i32 = arith.constant 0 : i32
    %c0_i32_0 = arith.constant 0 : i32
    return %arg1, %c0_i32 : i32, i32
  }
  func.func @transform_1(%arg0: i32, %arg1: i32) -> (i32, i32) {
    %c0_i32 = arith.constant 0 : i32
    %c0_i32_0 = arith.constant 0 : i32
    %c0_i32_1 = arith.constant 0 : i32
    return %c0_i32, %c0_i32_0 : i32, i32
  }
  func.func @transform_2(%arg0: i32, %arg1: i32) -> (i32, i32) {
    %c0_i32 = arith.constant 0 : i32
    %c0_i32_0 = arith.constant 0 : i32
    %c0_i32_1 = arith.constant 0 : i32
    return %c0_i32, %c0_i32_0 : i32, i32
  }
  func.func @transform_3(%arg0: i32, %arg1: i32) -> (i32, i32) {
    %c0_i32 = arith.constant 0 : i32
    %c0_i32_0 = arith.constant 0 : i32
    %c0_i32_1 = arith.constant 0 : i32
    return %c0_i32, %c0_i32_0 : i32, i32
  }
  func.func @transform_4(%arg0: i32, %arg1: i32) -> (i32, i32) {
    %c0_i32 = arith.constant 0 : i32
    %c0_i32_0 = arith.constant 0 : i32
    %c0_i32_1 = arith.constant 0 : i32
    return %c0_i32, %c0_i32_0 : i32, i32
  }
  func.func @transform_5(%arg0: i32, %arg1: i32) -> (i32, i32) {
    %c0_i32 = arith.constant 0 : i32
    %c0_i32_0 = arith.constant 0 : i32
    return %arg1, %c0_i32 : i32, i32
  }
  func.func @transform_6(%arg0: i32, %arg1: i32) -> (i32, i32) {
    %c0_i32 = arith.constant 0 : i32
    %c0_i32_0 = arith.constant 0 : i32
    return %arg1, %c0_i32 : i32, i32
  }
  func.func @transform_7(%arg0: i32, %arg1: i32) -> (i32, i32) {
    %c0_i32 = arith.constant 0 : i32
    %c0_i32_0 = arith.constant 0 : i32
    return %arg1, %c0_i32 : i32, i32
  }
  func.func @transform_8(%arg0: i32, %arg1: i32) -> (i32, i32) {
    %c0_i32 = arith.constant 0 : i32
    %c0_i32_0 = arith.constant 0 : i32
    return %arg1, %c0_i32 : i32, i32
  }
}

</mosaic_0001>

<llo_original>
// kernel: tpu_custom_call.1
$region0: #{tpu_custom_call.1}
  #allocation0 [shape = 'u32[]', space=smem, size = 0x4, offset = 0x4, fixed_abs, tag = 'smem constant byte address 0x4 - core index']
  #allocation1 [shape = 'u32[144,128]{1,0:T(1,128)}', space=vmem, size = 0x12000, scoped, tag = 'internal scratch']
  #allocation2 [shape = 'bf16[256,128]{1,0:T(8,128)(2,1)}', space=vmem, size = 0x10000, scoped, tag = 'scratch operand']
  #allocation3 [shape = 'bf16[256,128]{1,0:T(8,128)(2,1)}', space=vmem, size = 0x10000, scoped, tag = 'scratch operand']
  %s0 = inlined_call_operand.hbm [shape: bf16[256,256], index: 0, kind: input, shape index: {}]
  %s1 = inlined_call_operand.hbm [shape: bf16[256,128], index: 1, kind: input, shape index: {}]
  %s2 = inlined_call_operand.hbm [shape: bf16[128,128], index: 2, kind: input, shape index: {}]
  %s3 = inlined_call_operand.hbm [shape: bf16[128,128], index: 3, kind: input, shape index: {}]
  %s4 = inlined_call_operand.hbm [shape: bf16[128,128], index: 4, kind: input, shape index: {}]
  %s5 = inlined_call_operand.hbm [shape: f32[256,128], index: 5, kind: input, shape index: {}]
  %s6 = inlined_call_operand.hbm [shape: f32[256,128], index: 6, kind: input, shape index: {}]
  %s7 = inlined_call_operand.hbm [shape: f32[256,128], index: 7, kind: output, shape index: {0}]
  %s8 = inlined_call_operand.hbm [shape: f32[256,128], index: 8, kind: output, shape index: {1}]
  %9 = xla_tuple %s7, %s8
  %s10 = sld [smem:[#allocation0]]
  $region105: #{tpu_custom_call.1} parent=0
    _
  %s12 = ssub.s32 1, %s10
  %s13 = scalar_select 0, %s12, %s10
  $region1: #{tpu_custom_call.1} parent=0
    #allocation4 [shape = 'u8[131072]{0}', space=vmem, size = 0x20000, scoped, tag = 'input window, operand 0']
    #allocation5 [shape = 's32[2]{0}', space=sflag, size = 0x8, scoped, tag = 'scoped memory for tpu_custom_call.1']
    #allocation6 [shape = 's32[2]{0}', space=sflag, size = 0x8, scoped, tag = 'scoped memory for tpu_custom_call.1']
    #allocation7 [shape = 'u8[65536]{0}', space=vmem, size = 0x10000, scoped, tag = 'input window, operand 1, single buffered']
    #allocation8 [shape = 's32[1]{0}', space=sflag, size = 0x4, scoped, tag = 'scoped memory for tpu_custom_call.1']
    #allocation9 [shape = 'u8[32768]{0}', space=vmem, size = 0x8000, scoped, tag = 'input window, operand 2, single buffered']
    #allocation10 [shape = 'u8[32768]{0}', space=vmem, size = 0x8000, scoped, tag = 'input window, operand 3, single buffered']
    #allocation11 [shape = 's32[1]{0}', space=sflag, size = 0x4, scoped, tag = 'scoped memory for tpu_custom_call.1']
    #allocation12 [shape = 'u8[32768]{0}', space=vmem, size = 0x8000, scoped, tag = 'input window, operand 4, single buffered']
    #allocation13 [shape = 'u8[131072]{0}', space=vmem, size = 0x20000, scoped, tag = 'input window, operand 5']
    #allocation14 [shape = 's32[2]{0}', space=sflag, size = 0x8, scoped, tag = 'scoped memory for tpu_custom_call.1']
    #allocation15 [shape = 'u8[131072]{0}', space=vmem, size = 0x20000, scoped, tag = 'input window, operand 6']
    #allocation16 [shape = 'u8[131072]{0}', space=vmem, size = 0x20000, scoped, tag = 'output window, operand 0']
    #allocation17 [shape = 'u8[131072]{0}', space=vmem, size = 0x20000, scoped, tag = 'output window, operand 1']
    #allocation18 [shape = 's32[2]{0}', space=sflag, size = 0x8, scoped, tag = 'scoped memory for tpu_custom_call.1']
    %14 = vsyncpa [#allocation5], 0
    %s15 = scalar_lea.sflag [#allocation5], 1
    %16 = vsyncpa %s15, 0
    %17 = vsyncpa [#allocation8], 0
    %18 = vsyncpa [#allocation11], 0
    %19 = vsyncpa [#allocation14], 0
    %s20 = scalar_lea.sflag [#allocation14], 1
    %21 = vsyncpa %s20, 0
    %22 = vsyncpa [#allocation6], 0
    %s23 = scalar_lea.sflag [#allocation6], 1
    %24 = vsyncpa %s23, 0
    %25 = vsyncpa [#allocation18], 0
    %s26 = scalar_lea.sflag [#allocation18], 1
    %27 = vsyncpa %s26, 0
    loop: start=0, step=1, limit=6
    $region2: #{tpu_custom_call.1} parent=1 // loop_pre_header
      _
    $region3: #{tpu_custom_call.1} parent=1 // loop_header
      %s29 = sphi 0, %s33
      %p30 = scmp.ge.s32.totalorder %s29, 6
      %s36 = sphi 0, %s48
      %s37 = sphi 0, %s44
      %s38 = sphi 0, %s36
      %s39 = sphi 0, %s37
      %s40 = sphi 0, %s38
      %s41 = sphi 0, %s39
      %s51 = sphi 0, %s53
      %s54 = sphi 0, %s51
      %s55 = sphi 0, %s54
      %s71 = sphi 0, %s55
      %s75 = sphi 0, %s75
      %s77 = sphi 0, %s75
      %s78 = sphi 0, %s77
      %s92 = sphi 0, %s78
      %s96 = sphi 0, %s96
      %s98 = sphi 0, %s96
      %s99 = sphi 0, %s98
      %s113 = sphi 0, %s99
      %s117 = sphi 0, %s117
      %s119 = sphi 0, %s117
      %s120 = sphi 0, %s119
      %s134 = sphi 0, %s120
      %s138 = sphi 0, %s138
      %s140 = sphi 0, %s138
      %s141 = sphi 0, %s140
      %s155 = sphi 0, %s141
      %s161 = sphi 0, %s163
      %s164 = sphi 0, %s161
      %s165 = sphi 0, %s164
      %s181 = sphi 0, %s165
      %s187 = sphi 0, %s189
      %s190 = sphi 0, %s187
      %s191 = sphi 0, %s190
      %s207 = sphi 0, %s191
      %s213 = sphi 0, %s215
      %s216 = sphi 0, %s213
      %s217 = sphi 0, %s216
      %s233 = sphi 0, %s217
      %s239 = sphi 0, %s241
      %s242 = sphi 0, %s239
      %s243 = sphi 0, %s242
      %s259 = sphi 0, %s243
    $region4: #{tpu_custom_call.1} parent=1 // loop_header_branch
      %32 = sbr.rel (%p30) target = $region8
    $region5: #{tpu_custom_call.1} parent=1 // loop_body
      %s34 = ssub.s32 %s29, 1
      %s35 = ssub.s32 %s29, 2
      %s42 = sadd.s32 1, %s37
      %p43 = scmp.ge.s32.totalorder %s42, 2
      %s44 = scalar_select %p43, 0, %s42
      %s45 = sadd.s32 1, %s36
      %s46 = scalar_select %p43, %s45, %s36
      %p47 = scmp.ge.s32.totalorder %s46, 2
      %s48 = scalar_select %p47, 0, %s46
      %s49 = ssub.s32 %s37, %s44
      %p50 = scmp.eq.s32.totalorder %s49, 0
      %s52 = sadd.s32 %s51, 1
      %s53 = scalar_select %p50, %s51, %s52
      %p56 = pneg %p50
      %p57 = scmp.eq.s32.totalorder %s29, 3
      %p58 = por %p56, %p57
      %p59 = scmp.ne.s32.totalorder %s51, %s54
      %p60 = scmp.eq.s32.totalorder %s29, 0
      %p61 = por %p59, %p60
      %p62 = scmp.ne.s32.totalorder %s51, %s54
      %p63 = scmp.eq.s32.totalorder %s34, 3
      %p64 = por %p62, %p63
      %p65 = scmp.ne.s32.totalorder %s54, %s55
      %p66 = scmp.eq.s32.totalorder %s34, 0
      %p67 = por %p65, %p66
      %p68 = scmp.ne.s32.totalorder %s54, %s55
      %p69 = scmp.eq.s32.totalorder %s35, 3
      %p70 = por %p68, %p69
      %p72 = scmp.ne.s32.totalorder %s55, %s71
      %p73 = scmp.eq.s32.totalorder %s35, 0
      %p74 = por %p72, %p73
      %s76 = sadd.s32 %s75, 1
      %p79 = scmp.eq.s32.totalorder %s29, 3
      %p80 = scmp.ne.s32.totalorder %s75, %s77
      %p81 = scmp.eq.s32.totalorder %s29, 0
      %p82 = por %p80, %p81
      %p83 = scmp.ne.s32.totalorder %s75, %s77
      %p84 = scmp.eq.s32.totalorder %s34, 3
      %p85 = por %p83, %p84
      %p86 = scmp.ne.s32.totalorder %s77, %s78
      %p87 = scmp.eq.s32.totalorder %s34, 0
      %p88 = por %p86, %p87
      %p89 = scmp.ne.s32.totalorder %s77, %s78
      %p90 = scmp.eq.s32.totalorder %s35, 3
      %p91 = por %p89, %p90
      %p93 = scmp.ne.s32.totalorder %s78, %s92
      %p94 = scmp.eq.s32.totalorder %s35, 0
      %p95 = por %p93, %p94
      %s97 = sadd.s32 %s96, 1
      %p100 = scmp.eq.s32.totalorder %s29, 3
      %p101 = scmp.ne.s32.totalorder %s96, %s98
      %p102 = scmp.eq.s32.totalorder %s29, 0
      %p103 = por %p101, %p102
      %p104 = scmp.ne.s32.totalorder %s96, %s98
      %p105 = scmp.eq.s32.totalorder %s34, 3
      %p106 = por %p104, %p105
      %p107 = scmp.ne.s32.totalorder %s98, %s99
      %p108 = scmp.eq.s32.totalorder %s34, 0
      %p109 = por %p107, %p108
      %p110 = scmp.ne.s32.totalorder %s98, %s99
      %p111 = scmp.eq.s32.totalorder %s35, 3
      %p112 = por %p110, %p111
      %p114 = scmp.ne.s32.totalorder %s99, %s113
      %p115 = scmp.eq.s32.totalorder %s35, 0
      %p116 = por %p114, %p115
      %s118 = sadd.s32 %s117, 1
      %p121 = scmp.eq.s32.totalorder %s29, 3
      %p122 = scmp.ne.s32.totalorder %s117, %s119
      %p123 = scmp.eq.s32.totalorder %s29, 0
      %p124 = por %p122, %p123
      %p125 = scmp.ne.s32.totalorder %s117, %s119
      %p126 = scmp.eq.s32.totalorder %s34, 3
      %p127 = por %p125, %p126
      %p128 = scmp.ne.s32.totalorder %s119, %s120
      %p129 = scmp.eq.s32.totalorder %s34, 0
      %p130 = por %p128, %p129
      %p131 = scmp.ne.s32.totalorder %s119, %s120
      %p132 = scmp.eq.s32.totalorder %s35, 3
      %p133 = por %p131, %p132
      %p135 = scmp.ne.s32.totalorder %s120, %s134
      %p136 = scmp.eq.s32.totalorder %s35, 0
      %p137 = por %p135, %p136
      %s139 = sadd.s32 %s138, 1
      %p142 = scmp.eq.s32.totalorder %s29, 3
      %p143 = scmp.ne.s32.totalorder %s138, %s140
      %p144 = scmp.eq.s32.totalorder %s29, 0
      %p145 = por %p143, %p144
      %p146 = scmp.ne.s32.totalorder %s138, %s140
      %p147 = scmp.eq.s32.totalorder %s34, 3
      %p148 = por %p146, %p147
      %p149 = scmp.ne.s32.totalorder %s140, %s141
      %p150 = scmp.eq.s32.totalorder %s34, 0
      %p151 = por %p149, %p150
      %p152 = scmp.ne.s32.totalorder %s140, %s141
      %p153 = scmp.eq.s32.totalorder %s35, 3
      %p154 = por %p152, %p153
      %p156 = scmp.ne.s32.totalorder %s141, %s155
      %p157 = scmp.eq.s32.totalorder %s35, 0
      %p158 = por %p156, %p157
      %s159 = ssub.s32 %s37, %s44
      %p160 = scmp.eq.s32.totalorder %s159, 0
      %s162 = sadd.s32 %s161, 1
      %s163 = scalar_select %p160, %s161, %s162
      %p166 = pneg %p160
      %p167 = scmp.eq.s32.totalorder %s29, 3
      %p168 = por %p166, %p167
      %p169 = scmp.ne.s32.totalorder %s161, %s164
      %p170 = scmp.eq.s32.totalorder %s29, 0
      %p171 = por %p169, %p170
      %p172 = scmp.ne.s32.totalorder %s161, %s164
      %p173 = scmp.eq.s32.totalorder %s34, 3
      %p174 = por %p172, %p173
      %p175 = scmp.ne.s32.totalorder %s164, %s165
      %p176 = scmp.eq.s32.totalorder %s34, 0
      %p177 = por %p175, %p176
      %p178 = scmp.ne.s32.totalorder %s164, %s165
      %p179 = scmp.eq.s32.totalorder %s35, 3
      %p180 = por %p178, %p179
      %p182 = scmp.ne.s32.totalorder %s165, %s181
      %p183 = scmp.eq.s32.totalorder %s35, 0
      %p184 = por %p182, %p183
      %s185 = ssub.s32 %s37, %s44
      %p186 = scmp.eq.s32.totalorder %s185, 0
      %s188 = sadd.s32 %s187, 1
      %s189 = scalar_select %p186, %s187, %s188
      %p192 = pneg %p186
      %p193 = scmp.eq.s32.totalorder %s29, 3
      %p194 = por %p192, %p193
      %p195 = scmp.ne.s32.totalorder %s187, %s190
      %p196 = scmp.eq.s32.totalorder %s29, 0
      %p197 = por %p195, %p196
      %p198 = scmp.ne.s32.totalorder %s187, %s190
      %p199 = scmp.eq.s32.totalorder %s34, 3
      %p200 = por %p198, %p199
      %p201 = scmp.ne.s32.totalorder %s190, %s191
      %p202 = scmp.eq.s32.totalorder %s34, 0
      %p203 = por %p201, %p202
      %p204 = scmp.ne.s32.totalorder %s190, %s191
      %p205 = scmp.eq.s32.totalorder %s35, 3
      %p206 = por %p204, %p205
      %p208 = scmp.ne.s32.totalorder %s191, %s207
      %p209 = scmp.eq.s32.totalorder %s35, 0
      %p210 = por %p208, %p209
      %s211 = ssub.s32 %s37, %s44
      %p212 = scmp.eq.s32.totalorder %s211, 0
      %s214 = sadd.s32 %s213, 1
      %s215 = scalar_select %p212, %s213, %s214
      %p218 = pneg %p212
      %p219 = scmp.eq.s32.totalorder %s29, 3
      %p220 = por %p218, %p219
      %p221 = scmp.ne.s32.totalorder %s213, %s216
      %p222 = scmp.eq.s32.totalorder %s29, 0
      %p223 = por %p221, %p222
      %p224 = scmp.ne.s32.totalorder %s213, %s216
      %p225 = scmp.eq.s32.totalorder %s34, 3
      %p226 = por %p224, %p225
      %p227 = scmp.ne.s32.totalorder %s216, %s217
      %p228 = scmp.eq.s32.totalorder %s34, 0
      %p229 = por %p227, %p228
      %p230 = scmp.ne.s32.totalorder %s216, %s217
      %p231 = scmp.eq.s32.totalorder %s35, 3
      %p232 = por %p230, %p231
      %p234 = scmp.ne.s32.totalorder %s217, %s233
      %p235 = scmp.eq.s32.totalorder %s35, 0
      %p236 = por %p234, %p235
      %s237 = ssub.s32 %s37, %s44
      %p238 = scmp.eq.s32.totalorder %s237, 0
      %s240 = sadd.s32 %s239, 1
      %s241 = scalar_select %p238, %s239, %s240
      %p244 = pneg %p238
      %p245 = scmp.eq.s32.totalorder %s29, 3
      %p246 = por %p244, %p245
      %p247 = scmp.ne.s32.totalorder %s239, %s242
      %p248 = scmp.eq.s32.totalorder %s29, 0
      %p249 = por %p247, %p248
      %p250 = scmp.ne.s32.totalorder %s239, %s242
      %p251 = scmp.eq.s32.totalorder %s34, 3
      %p252 = por %p250, %p251
      %p253 = scmp.ne.s32.totalorder %s242, %s243
      %p254 = scmp.eq.s32.totalorder %s34, 0
      %p255 = por %p253, %p254
      %p256 = scmp.ne.s32.totalorder %s242, %s243
      %p257 = scmp.eq.s32.totalorder %s35, 3
      %p258 = por %p256, %p257
      %p260 = scmp.ne.s32.totalorder %s243, %s259
      %p261 = scmp.eq.s32.totalorder %s35, 0
      %p262 = por %p260, %p261
      %p263 = scmp.le.s32.totalorder 1, %s29
      %p264 = scmp.lt.s32.totalorder %s29, 5
      %p265 = pnand %p263, %p264
      %p266 = pneg %p265
      // Predicated region
      $region9: #{tpu_custom_call.1} parent=5 // pred_check
        _
      $region10: #{tpu_custom_call.1} parent=5 // pred_check_branch
        %268 = sbr.rel (%p265) target = $region12
      $region11: #{tpu_custom_call.1} parent=5 // pred_region
        %s269 = ssub.s32 %s29, 1
        // Predicated region
        $region13: #{tpu_custom_call.1} parent=11 // pred_check
          %p270 = pneg %p88
        $region14: #{tpu_custom_call.1} parent=11 // pred_check_branch
          %272 = sbr.rel (%p270) target = $region16
        $region15: #{tpu_custom_call.1} parent=11 // pred_region
          %s274 = ssub.s32 2048, 2048
          %275 = vsyncadd [#allocation8], %s274
          %s276 = sshll.u32 [#allocation7], 4
          %s277 = int_to_ptr.vmem [resolvable:$true] %s276
          %282 = dma.hbm_to_vmem [thread:$0]  %s1, 2048, %s277, [#allocation8], 64, 64, 4
        $region16: #{tpu_custom_call.1} parent=11 // pred_fallthru
          _
        // Predicated region
        $region17: #{tpu_custom_call.1} parent=11 // pred_check
          %p283 = pneg %p109
        $region18: #{tpu_custom_call.1} parent=11 // pred_check_branch
          %285 = sbr.rel (%p283) target = $region20
        $region19: #{tpu_custom_call.1} parent=11 // pred_region
          %s287 = ssub.s32 1024, 1024
          %288 = vsyncadd [#allocation8], %s287
          %s289 = sshll.u32 [#allocation9], 4
          %s290 = int_to_ptr.vmem [resolvable:$true] %s289
          %295 = dma.hbm_to_vmem [thread:$0]  %s2, 1024, %s290, [#allocation8], 64, 64, 4
        $region20: #{tpu_custom_call.1} parent=11 // pred_fallthru
          _
        // Predicated region
        $region21: #{tpu_custom_call.1} parent=11 // pred_check
          %p296 = pneg %p130
        $region22: #{tpu_custom_call.1} parent=11 // pred_check_branch
          %298 = sbr.rel (%p296) target = $region24
        $region23: #{tpu_custom_call.1} parent=11 // pred_region
          %s300 = ssub.s32 1024, 1024
          %301 = vsyncadd [#allocation11], %s300
          %s302 = sshll.u32 [#allocation10], 4
          %s303 = int_to_ptr.vmem [resolvable:$true] %s302
          %308 = dma.hbm_to_vmem [thread:$0]  %s3, 1024, %s303, [#allocation11], 64, 64, 4
        $region24: #{tpu_custom_call.1} parent=11 // pred_fallthru
          _
        // Predicated region
        $region25: #{tpu_custom_call.1} parent=11 // pred_check
          %p309 = pneg %p151
        $region26: #{tpu_custom_call.1} parent=11 // pred_check_branch
          %311 = sbr.rel (%p309) target = $region28
        $region27: #{tpu_custom_call.1} parent=11 // pred_region
          %s313 = ssub.s32 1024, 1024
          %314 = vsyncadd [#allocation11], %s313
          %s315 = sshll.u32 [#allocation12], 4
          %s316 = int_to_ptr.vmem [resolvable:$true] %s315
          %321 = dma.hbm_to_vmem [thread:$0]  %s4, 1024, %s316, [#allocation11], 64, 64, 4
        $region28: #{tpu_custom_call.1} parent=11 // pred_fallthru
          _
      $region12: #{tpu_custom_call.1} parent=5 // pred_fallthru
        _
      %p322 = scmp.lt.s32.totalorder %s29, 4
      // Predicated region
      $region29: #{tpu_custom_call.1} parent=5 // pred_check
        %p323 = pneg %p322
      $region30: #{tpu_custom_call.1} parent=5 // pred_check_branch
        %325 = sbr.rel (%p323) target = $region32
      $region31: #{tpu_custom_call.1} parent=5 // pred_region
        // Predicated region
        $region33: #{tpu_custom_call.1} parent=31 // pred_check
          %p326 = pneg %p61
        $region34: #{tpu_custom_call.1} parent=31 // pred_check_branch
          %328 = sbr.rel (%p326) target = $region36
        $region35: #{tpu_custom_call.1} parent=31 // pred_region
          %s329 = sand.u32 %s51, 1
          %s330 = scalar_lea.sflag [#allocation5], %s329
          %s331 = sand.u32 %s51, 1
          %s332 = smul.addr %s331, 128
          %s333 = scalar_lea.vmem [#allocation4], %s332
          %s334 = smul.u32 16, %s37
          %s336 = ssub.s32 2048, 2048
          %337 = vsyncadd %s330, %s336
          %s338 = smul.addr %s334, 2
          %s339 = smul.addr %s338, 64
          %s340 = scalar_lea.hbm %s0, %s339
          %s341 = sshll.u32 %s333, 4
          %s342 = int_to_ptr.vmem [resolvable:$true] %s341
          %347 = dma.hbm_to_vmem [thread:$0]  %s340, 2048, %s342, %s330, 128, 128, 8
        $region36: #{tpu_custom_call.1} parent=31 // pred_fallthru
          _
        // Predicated region
        $region37: #{tpu_custom_call.1} parent=31 // pred_check
          %p348 = pneg %p171
        $region38: #{tpu_custom_call.1} parent=31 // pred_check_branch
          %350 = sbr.rel (%p348) target = $region40
        $region39: #{tpu_custom_call.1} parent=31 // pred_region
          %s351 = sand.u32 %s29, 1
          %s352 = scalar_lea.sflag [#allocation14], %s351
          %s353 = sand.u32 %s161, 1
          %s354 = smul.addr %s353, 128
          %s355 = scalar_lea.vmem [#allocation13], %s354
          %s356 = smul.u32 16, %s37
          %s358 = ssub.s32 2048, 2048
          %359 = vsyncadd %s352, %s358
          %s360 = smul.addr %s356, 128
          %s361 = scalar_lea.hbm %s5, %s360
          %s362 = sshll.u32 %s355, 4
          %s363 = int_to_ptr.vmem [resolvable:$true] %s362
          %368 = dma.hbm_to_vmem [thread:$0]  %s361, 2048, %s363, %s352, 128, 128, 8
        $region40: #{tpu_custom_call.1} parent=31 // pred_fallthru
          _
        // Predicated region
        $region41: #{tpu_custom_call.1} parent=31 // pred_check
          %p369 = pneg %p197
        $region42: #{tpu_custom_call.1} parent=31 // pred_check_branch
          %371 = sbr.rel (%p369) target = $region44
        $region43: #{tpu_custom_call.1} parent=31 // pred_region
          %s372 = sand.u32 %s29, 1
          %s373 = scalar_lea.sflag [#allocation14], %s372
          %s374 = sand.u32 %s187, 1
          %s375 = smul.addr %s374, 128
          %s376 = scalar_lea.vmem [#allocation15], %s375
          %s377 = smul.u32 16, %s37
          %s379 = ssub.s32 2048, 2048
          %380 = vsyncadd %s373, %s379
          %s381 = smul.addr %s377, 128
          %s382 = scalar_lea.hbm %s6, %s381
          %s383 = sshll.u32 %s376, 4
          %s384 = int_to_ptr.vmem [resolvable:$true] %s383
          %389 = dma.hbm_to_vmem [thread:$0]  %s382, 2048, %s384, %s373, 128, 128, 8
        $region44: #{tpu_custom_call.1} parent=31 // pred_fallthru
          _
      $region32: #{tpu_custom_call.1} parent=5 // pred_fallthru
        _
      %p390 = scmp.le.s32.totalorder 1, %s29
      %p391 = scmp.lt.s32.totalorder %s29, 5
      %p392 = pnand %p390, %p391
      %p393 = pneg %p392
      // Predicated region
      $region45: #{tpu_custom_call.1} parent=5 // pred_check
        _
      $region46: #{tpu_custom_call.1} parent=5 // pred_check_branch
        %395 = sbr.rel (%p392) target = $region48
      $region47: #{tpu_custom_call.1} parent=5 // pred_region
        %s396 = ssub.s32 %s29, 1
        %s397 = sand.u32 %s54, 1
        %s398 = scalar_lea.sflag [#allocation5], %s397
        %s399 = sand.u32 %s54, 1
        %s400 = smul.addr %s399, 128
        %s401 = scalar_lea.vmem [#allocation4], %s400
        // Predicated region
        $region49: #{tpu_custom_call.1} parent=47 // pred_check
          %p402 = pneg %p67
        $region50: #{tpu_custom_call.1} parent=47 // pred_check_branch
          %404 = sbr.rel (%p402) target = $region52
        $region51: #{tpu_custom_call.1} parent=47 // pred_region
          %405 = dma.done %s398, 2048
        $region52: #{tpu_custom_call.1} parent=47 // pred_fallthru
          _
        // Predicated region
        $region53: #{tpu_custom_call.1} parent=47 // pred_check
          %p406 = pneg %p88
        $region54: #{tpu_custom_call.1} parent=47 // pred_check_branch
          %408 = sbr.rel (%p406) target = $region56
        $region55: #{tpu_custom_call.1} parent=47 // pred_region
          %409 = dma.done [#allocation8], 2048
        $region56: #{tpu_custom_call.1} parent=47 // pred_fallthru
          _
        // Predicated region
        $region57: #{tpu_custom_call.1} parent=47 // pred_check
          %p410 = pneg %p109
        $region58: #{tpu_custom_call.1} parent=47 // pred_check_branch
          %412 = sbr.rel (%p410) target = $region60
        $region59: #{tpu_custom_call.1} parent=47 // pred_region
          %413 = dma.done [#allocation8], 1024
        $region60: #{tpu_custom_call.1} parent=47 // pred_fallthru
          _
        // Predicated region
        $region61: #{tpu_custom_call.1} parent=47 // pred_check
          %p414 = pneg %p130
        $region62: #{tpu_custom_call.1} parent=47 // pred_check_branch
          %416 = sbr.rel (%p414) target = $region64
        $region63: #{tpu_custom_call.1} parent=47 // pred_region
          %417 = dma.done [#allocation11], 1024
        $region64: #{tpu_custom_call.1} parent=47 // pred_fallthru
          _
        // Predicated region
        $region65: #{tpu_custom_call.1} parent=47 // pred_check
          %p418 = pneg %p151
        $region66: #{tpu_custom_call.1} parent=47 // pred_check_branch
          %420 = sbr.rel (%p418) target = $region68
        $region67: #{tpu_custom_call.1} parent=47 // pred_region
          %421 = dma.done [#allocation11], 1024
        $region68: #{tpu_custom_call.1} parent=47 // pred_fallthru
          _
        %s422 = sand.u32 %s34, 1
        %s423 = scalar_lea.sflag [#allocation14], %s422
        %s424 = sand.u32 %s164, 1
        %s425 = smul.addr %s424, 128
        %s426 = scalar_lea.vmem [#allocation13], %s425
        // Predicated region
        $region69: #{tpu_custom_call.1} parent=47 // pred_check
          %p427 = pneg %p177
        $region70: #{tpu_custom_call.1} parent=47 // pred_check_branch
          %429 = sbr.rel (%p427) target = $region72
        $region71: #{tpu_custom_call.1} parent=47 // pred_region
          %430 = dma.done %s423, 2048
        $region72: #{tpu_custom_call.1} parent=47 // pred_fallthru
          _
        %s431 = sand.u32 %s34, 1
        %s432 = scalar_lea.sflag [#allocation14], %s431
        %s433 = sand.u32 %s190, 1
        %s434 = smul.addr %s433, 128
        %s435 = scalar_lea.vmem [#allocation15], %s434
        // Predicated region
        $region73: #{tpu_custom_call.1} parent=47 // pred_check
          %p436 = pneg %p203
        $region74: #{tpu_custom_call.1} parent=47 // pred_check_branch
          %438 = sbr.rel (%p436) target = $region76
        $region75: #{tpu_custom_call.1} parent=47 // pred_region
          %439 = dma.done %s432, 2048
        $region76: #{tpu_custom_call.1} parent=47 // pred_fallthru
          _
        %s440 = sand.u32 %s54, 1
        %s441 = scalar_lea.sflag [#allocation5], %s440
        %s442 = sand.u32 %s54, 1
        %s443 = smul.addr %s442, 128
        %s444 = scalar_lea.vmem [#allocation4], %s443
        %p445 = pneg %p67
        %p446 = pneg %p64
        %p447 = pneg %p88
        %p448 = pneg %p85
        %p449 = pneg %p109
        %p450 = pneg %p106
        %p451 = pneg %p130
        %p452 = pneg %p127
        %p453 = pneg %p151
        %p454 = pneg %p148
        %s455 = sand.u32 %s34, 1
        %s456 = scalar_lea.sflag [#allocation14], %s455
        %s457 = sand.u32 %s164, 1
        %s458 = smul.addr %s457, 128
        %s459 = scalar_lea.vmem [#allocation13], %s458
        %p460 = pneg %p177
        %p461 = pneg %p174
        %s462 = sand.u32 %s34, 1
        %s463 = scalar_lea.sflag [#allocation14], %s462
        %s464 = sand.u32 %s190, 1
        %s465 = smul.addr %s464, 128
        %s466 = scalar_lea.vmem [#allocation15], %s465
        %p467 = pneg %p203
        %p468 = pneg %p200
        %p469 = pneg %p229
        %p470 = pneg %p226
        %s471 = sand.u32 %s216, 1
        %s472 = scalar_lea.sflag [#allocation6], %s471
        %s473 = sand.u32 %s216, 1
        %s474 = smul.addr %s473, 128
        %s475 = scalar_lea.vmem [#allocation16], %s474
        %p476 = pneg %p255
        %p477 = pneg %p252
        %s478 = sand.u32 %s242, 1
        %s479 = scalar_lea.sflag [#allocation18], %s478
        %s480 = sand.u32 %s242, 1
        %s481 = smul.addr %s480, 128
        %s482 = scalar_lea.vmem [#allocation17], %s481
        %s483 = smul.u32 16, %s39
        %s484 = smul.u32 16, %s39
        %s485 = smul.u32 16, %s39
        %s486 = smul.u32 16, %s39
        %s487 = smul.u32 16, %s39
        %s489 = smul.u32 %s39, 128
        %v490 = vld [vmem:[%s401] sm:$0xff]
        %v491 = vld [vmem:[%s401 + $0x8] sm:$0xff]
        %v492 = vld [vmem:[%s401 + $0x10] sm:$0xff]
        %v493 = vld [vmem:[%s401 + $0x18] sm:$0xff]
        %v494 = vld [vmem:[%s401 + $0x20] sm:$0xff]
        %v495 = vld [vmem:[%s401 + $0x28] sm:$0xff]
        %v496 = vld [vmem:[%s401 + $0x30] sm:$0xff]
        %v497 = vld [vmem:[%s401 + $0x38] sm:$0xff]
        %v498 = vld [vmem:[%s401 + $0x40] sm:$0xff]
        %v499 = vld [vmem:[%s401 + $0x48] sm:$0xff]
        %v500 = vld [vmem:[%s401 + $0x50] sm:$0xff]
        %v501 = vld [vmem:[%s401 + $0x58] sm:$0xff]
        %v502 = vld [vmem:[%s401 + $0x60] sm:$0xff]
        %v503 = vld [vmem:[%s401 + $0x68] sm:$0xff]
        %v504 = vld [vmem:[%s401 + $0x70] sm:$0xff]
        %v505 = vld [vmem:[%s401 + $0x78] sm:$0xff]
        %p506 = scmp.eq.s32.totalorder %s38, 0
        // Predicated region
        $region77: #{tpu_custom_call.1} parent=47 // pred_check
          %p507 = pneg %p506
        $region78: #{tpu_custom_call.1} parent=47 // pred_check_branch
          %509 = sbr.rel (%p507) target = $region80
        $region79: #{tpu_custom_call.1} parent=47 // pred_region
          %v510 = vld [vmem:[#allocation7] sm:$0xf]
          %v511 = vld [vmem:[#allocation7 + $0x4] sm:$0xf]
          %v512 = vld [vmem:[#allocation7 + $0x8] sm:$0xf]
          %v513 = vld [vmem:[#allocation7 + $0xc] sm:$0xf]
          %v514 = vld [vmem:[#allocation7 + $0x10] sm:$0xf]
          %v515 = vld [vmem:[#allocation7 + $0x14] sm:$0xf]
          %v516 = vld [vmem:[#allocation7 + $0x18] sm:$0xf]
          %v517 = vld [vmem:[#allocation7 + $0x1c] sm:$0xf]
          %v518 = vld [vmem:[#allocation7 + $0x20] sm:$0xf]
          %v519 = vld [vmem:[#allocation7 + $0x24] sm:$0xf]
          %v520 = vld [vmem:[#allocation7 + $0x28] sm:$0xf]
          %v521 = vld [vmem:[#allocation7 + $0x2c] sm:$0xf]
          %v522 = vld [vmem:[#allocation7 + $0x30] sm:$0xf]
          %v523 = vld [vmem:[#allocation7 + $0x34] sm:$0xf]
          %v524 = vld [vmem:[#allocation7 + $0x38] sm:$0xf]
          %v525 = vld [vmem:[#allocation7 + $0x3c] sm:$0xf]
          %v526 = vld [vmem:[#allocation7 + $0x40] sm:$0xf]
          %v527 = vld [vmem:[#allocation7 + $0x44] sm:$0xf]
          %v528 = vld [vmem:[#allocation7 + $0x48] sm:$0xf]
          %v529 = vld [vmem:[#allocation7 + $0x4c] sm:$0xf]
          %v530 = vld [vmem:[#allocation7 + $0x50] sm:$0xf]
          %v531 = vld [vmem:[#allocation7 + $0x54] sm:$0xf]
          %v532 = vld [vmem:[#allocation7 + $0x58] sm:$0xf]
          %v533 = vld [vmem:[#allocation7 + $0x5c] sm:$0xf]
          %v534 = vld [vmem:[#allocation7 + $0x60] sm:$0xf]
          %v535 = vld [vmem:[#allocation7 + $0x64] sm:$0xf]
          %v536 = vld [vmem:[#allocation7 + $0x68] sm:$0xf]
          %v537 = vld [vmem:[#allocation7 + $0x6c] sm:$0xf]
          %v538 = vld [vmem:[#allocation7 + $0x70] sm:$0xf]
          %v539 = vld [vmem:[#allocation7 + $0x74] sm:$0xf]
          %v540 = vld [vmem:[#allocation7 + $0x78] sm:$0xf]
          %v541 = vld [vmem:[#allocation7 + $0x7c] sm:$0xf]
          %v558 = vunpack.c.l.b16 %v490
          %v559 = vunpack.c.h.b16 %v490
          %v560 = vunpack.c.l.b16 %v491
          %v561 = vunpack.c.h.b16 %v491
          %v562 = vunpack.c.l.b16 %v492
          %v563 = vunpack.c.h.b16 %v492
          %v564 = vunpack.c.l.b16 %v493
          %v565 = vunpack.c.h.b16 %v493
          %v566 = vunpack.c.l.b16 %v494
          %v567 = vunpack.c.h.b16 %v494
          %v568 = vunpack.c.l.b16 %v495
          %v569 = vunpack.c.h.b16 %v495
          %v570 = vunpack.c.l.b16 %v496
          %v571 = vunpack.c.h.b16 %v496
          %v572 = vunpack.c.l.b16 %v497
          %v573 = vunpack.c.h.b16 %v497
          %v574 = vunpack.c.l.b16 %v498
          %v575 = vunpack.c.h.b16 %v498
          %v576 = vunpack.c.l.b16 %v499
          %v577 = vunpack.c.h.b16 %v499
          %v578 = vunpack.c.l.b16 %v500
          %v579 = vunpack.c.h.b16 %v500
          %v580 = vunpack.c.l.b16 %v501
          %v581 = vunpack.c.h.b16 %v501
          %v582 = vunpack.c.l.b16 %v502
          %v583 = vunpack.c.h.b16 %v502
          %v584 = vunpack.c.l.b16 %v503
          %v585 = vunpack.c.h.b16 %v503
          %v586 = vunpack.c.l.b16 %v504
          %v587 = vunpack.c.h.b16 %v504
          %v588 = vunpack.c.l.b16 %v505
          %v589 = vunpack.c.h.b16 %v505
          %v590 = vpack.c.b16 %v560, %v558
          %v591 = vpack.c.b16 %v561, %v559
          %v592 = vpack.c.b16 %v564, %v562
          %v593 = vpack.c.b16 %v565, %v563
          %v594 = vpack.c.b16 %v568, %v566
          %v595 = vpack.c.b16 %v569, %v567
          %v596 = vpack.c.b16 %v572, %v570
          %v597 = vpack.c.b16 %v573, %v571
          %v598 = vpack.c.b16 %v576, %v574
          %v599 = vpack.c.b16 %v577, %v575
          %v600 = vpack.c.b16 %v580, %v578
          %v601 = vpack.c.b16 %v581, %v579
          %v602 = vpack.c.b16 %v584, %v582
          %v603 = vpack.c.b16 %v585, %v583
          %v604 = vpack.c.b16 %v588, %v586
          %v605 = vpack.c.b16 %v589, %v587
          %v654 = vunpack.c.l.b16 %v510
          %v655 = vunpack.c.l.b16 %v511
          %v656 = vunpack.c.l.b16 %v512
          %v657 = vunpack.c.l.b16 %v513
          %v658 = vunpack.c.l.b16 %v514
          %v659 = vunpack.c.l.b16 %v515
          %v660 = vunpack.c.l.b16 %v516
          %v661 = vunpack.c.l.b16 %v517
          %v662 = vunpack.c.l.b16 %v518
          %v663 = vunpack.c.l.b16 %v519
          %v664 = vunpack.c.l.b16 %v520
          %v665 = vunpack.c.l.b16 %v521
          %v666 = vunpack.c.l.b16 %v522
          %v667 = vunpack.c.l.b16 %v523
          %v668 = vunpack.c.l.b16 %v524
          %v669 = vunpack.c.l.b16 %v525
          %v670 = vunpack.c.l.b16 %v526
          %v671 = vunpack.c.l.b16 %v527
          %v672 = vunpack.c.l.b16 %v528
          %v673 = vunpack.c.l.b16 %v529
          %v674 = vunpack.c.l.b16 %v530
          %v675 = vunpack.c.l.b16 %v531
          %v676 = vunpack.c.l.b16 %v532
          %v677 = vunpack.c.l.b16 %v533
          %v678 = vunpack.c.l.b16 %v534
          %v679 = vunpack.c.l.b16 %v535
          %v680 = vunpack.c.l.b16 %v536
          %v681 = vunpack.c.l.b16 %v537
          %v682 = vunpack.c.l.b16 %v538
          %v683 = vunpack.c.l.b16 %v539
          %v684 = vunpack.c.l.b16 %v540
          %v685 = vunpack.c.l.b16 %v541
          %v686 = vpack.c.b16 %v655, %v654
          %v687 = vpack.c.b16 %v657, %v656
          %v688 = vpack.c.b16 %v659, %v658
          %v689 = vpack.c.b16 %v661, %v660
          %v690 = vpack.c.b16 %v663, %v662
          %v691 = vpack.c.b16 %v665, %v664
          %v692 = vpack.c.b16 %v667, %v666
          %v693 = vpack.c.b16 %v669, %v668
          %v694 = vpack.c.b16 %v671, %v670
          %v695 = vpack.c.b16 %v673, %v672
          %v696 = vpack.c.b16 %v675, %v674
          %v697 = vpack.c.b16 %v677, %v676
          %v698 = vpack.c.b16 %v679, %v678
          %v699 = vpack.c.b16 %v681, %v680
          %v700 = vpack.c.b16 %v683, %v682
          %v701 = vpack.c.b16 %v685, %v684
          %718 = vmatprep.subr.bf16.mxu0 0
          %719 = vmatpush1.bf16.msra.mxu0 %v693
          %720 = vmatprep.subr.bf16.mxu0 0
          %721 = vmatpush1.bf16.msra.mxu0 %v692
          %722 = vmatprep.subr.bf16.mxu0 0
          %723 = vmatpush1.bf16.msra.mxu0 %v691
          %724 = vmatprep.subr.bf16.mxu0 0
          %725 = vmatpush1.bf16.msra.mxu0 %v690
          %726 = vmatprep.subr.bf16.mxu0 0
          %727 = vmatpush1.bf16.msra.mxu0 %v689
          %728 = vmatprep.subr.bf16.mxu0 0
          %729 = vmatpush1.bf16.msra.mxu0 %v688
          %730 = vmatprep.subr.bf16.mxu0 0
          %731 = vmatpush1.bf16.msra.mxu0 %v687
          %732 = vmatprep.subr.bf16.mxu0 0
          %733 = vmatpush1.bf16.msra.mxu0 %v686
          %734 = vmatprep.subr.bf16.mxu0 0
          %735 = vmatpush2.bf16.msra.mxu0 %v701
          %736 = vmatprep.subr.bf16.mxu0 0
          %737 = vmatpush2.bf16.msra.mxu0 %v700
          %738 = vmatprep.subr.bf16.mxu0 0
          %739 = vmatpush2.bf16.msra.mxu0 %v699
          %740 = vmatprep.subr.bf16.mxu0 0
          %741 = vmatpush2.bf16.msra.mxu0 %v698
          %742 = vmatprep.subr.bf16.mxu0 0
          %743 = vmatpush2.bf16.msra.mxu0 %v697
          %744 = vmatprep.subr.bf16.mxu0 0
          %745 = vmatpush2.bf16.msra.mxu0 %v696
          %746 = vmatprep.subr.bf16.mxu0 0
          %747 = vmatpush2.bf16.msra.mxu0 %v695
          %748 = vmatprep.subr.bf16.mxu0 0
          %749 = vmatpush2.bf16.msra.mxu0 %v694
          %750 = vmatprep.mubr.bf16.mxu0 %v591
          %751 = vmatmul.mubr.bf16.gmra.mxu0 %v590
          %v752 = vpop.f32.mrf.mxu0
          %v753 = vadd.f32 0.0, %v752
          %v754 = vpop.f32.mrf.mxu0
          %v755 = vpop.f32.mrf.mxu0
          %v756 = vadd.f32 0.0, %v755
          %v757 = vpop.f32.mrf.mxu0
          %758 = vmatprep.mubr.bf16.mxu0 %v593
          %759 = vmatmul.mubr.bf16.gmra.mxu0 %v592
          %v760 = vpop.f32.mrf.mxu0
          %v761 = vadd.f32 0.0, %v760
          %v762 = vpop.f32.mrf.mxu0
          %v763 = vpop.f32.mrf.mxu0
          %v764 = vadd.f32 0.0, %v763
          %v765 = vpop.f32.mrf.mxu0
          %766 = vmatprep.mubr.bf16.mxu0 %v595
          %767 = vmatmul.mubr.bf16.gmra.mxu0 %v594
          %v768 = vpop.f32.mrf.mxu0
          %v769 = vadd.f32 0.0, %v768
          %v770 = vpop.f32.mrf.mxu0
          %v771 = vpop.f32.mrf.mxu0
          %v772 = vadd.f32 0.0, %v771
          %v773 = vpop.f32.mrf.mxu0
          %774 = vmatprep.mubr.bf16.mxu0 %v597
          %775 = vmatmul.mubr.bf16.gmra.mxu0 %v596
          %v776 = vpop.f32.mrf.mxu0
          %v777 = vadd.f32 0.0, %v776
          %v778 = vpop.f32.mrf.mxu0
          %v779 = vpop.f32.mrf.mxu0
          %v780 = vadd.f32 0.0, %v779
          %v781 = vpop.f32.mrf.mxu0
          %782 = vmatprep.mubr.bf16.mxu0 %v599
          %783 = vmatmul.mubr.bf16.gmra.mxu0 %v598
          %v784 = vpop.f32.mrf.mxu0
          %v785 = vadd.f32 0.0, %v784
          %v786 = vpop.f32.mrf.mxu0
          %v787 = vpop.f32.mrf.mxu0
          %v788 = vadd.f32 0.0, %v787
          %v789 = vpop.f32.mrf.mxu0
          %790 = vmatprep.mubr.bf16.mxu0 %v601
          %791 = vmatmul.mubr.bf16.gmra.mxu0 %v600
          %v792 = vpop.f32.mrf.mxu0
          %v793 = vadd.f32 0.0, %v792
          %v794 = vpop.f32.mrf.mxu0
          %v795 = vpop.f32.mrf.mxu0
          %v796 = vadd.f32 0.0, %v795
          %v797 = vpop.f32.mrf.mxu0
          %798 = vmatprep.mubr.bf16.mxu0 %v603
          %799 = vmatmul.mubr.bf16.gmra.mxu0 %v602
          %v800 = vpop.f32.mrf.mxu0
          %v801 = vadd.f32 0.0, %v800
          %v802 = vpop.f32.mrf.mxu0
          %v803 = vpop.f32.mrf.mxu0
          %v804 = vadd.f32 0.0, %v803
          %v805 = vpop.f32.mrf.mxu0
          %806 = vmatprep.mubr.bf16.mxu0 %v605
          %807 = vmatmul.mubr.bf16.gmra.mxu0 %v604
          %v808 = vpop.f32.mrf.mxu0
          %v809 = vadd.f32 0.0, %v808
          %v810 = vpop.f32.mrf.mxu0
          %v811 = vpop.f32.mrf.mxu0
          %v812 = vadd.f32 0.0, %v811
          %v813 = vpop.f32.mrf.mxu0
          %814 = vdwg.mxu0
          %v815 = vpack.c.bf16 %v756, %v753
          %v816 = vpack.c.bf16 %v764, %v761
          %v817 = vpack.c.bf16 %v772, %v769
          %v818 = vpack.c.bf16 %v780, %v777
          %v819 = vpack.c.bf16 %v788, %v785
          %v820 = vpack.c.bf16 %v796, %v793
          %v821 = vpack.c.bf16 %v804, %v801
          %v822 = vpack.c.bf16 %v812, %v809
          %v823 = vld [vmem:[#allocation9] sm:$0xf]
          %v824 = vld [vmem:[#allocation9 + $0x4] sm:$0xf]
          %v825 = vld [vmem:[#allocation9 + $0x8] sm:$0xf]
          %v826 = vld [vmem:[#allocation9 + $0xc] sm:$0xf]
          %v827 = vld [vmem:[#allocation9 + $0x10] sm:$0xf]
          %v828 = vld [vmem:[#allocation9 + $0x14] sm:$0xf]
          %v829 = vld [vmem:[#allocation9 + $0x18] sm:$0xf]
          %v830 = vld [vmem:[#allocation9 + $0x1c] sm:$0xf]
          %v831 = vld [vmem:[#allocation9 + $0x20] sm:$0xf]
          %v832 = vld [vmem:[#allocation9 + $0x24] sm:$0xf]
          %v833 = vld [vmem:[#allocation9 + $0x28] sm:$0xf]
          %v834 = vld [vmem:[#allocation9 + $0x2c] sm:$0xf]
          %v835 = vld [vmem:[#allocation9 + $0x30] sm:$0xf]
          %v836 = vld [vmem:[#allocation9 + $0x34] sm:$0xf]
          %v837 = vld [vmem:[#allocation9 + $0x38] sm:$0xf]
          %v838 = vld [vmem:[#allocation9 + $0x3c] sm:$0xf]
          %v855 = vunpack.c.l.b16 %v823
          %v856 = vunpack.c.l.b16 %v824
          %v857 = vunpack.c.l.b16 %v825
          %v858 = vunpack.c.l.b16 %v826
          %v859 = vunpack.c.l.b16 %v827
          %v860 = vunpack.c.l.b16 %v828
          %v861 = vunpack.c.l.b16 %v829
          %v862 = vunpack.c.l.b16 %v830
          %v863 = vunpack.c.l.b16 %v831
          %v864 = vunpack.c.l.b16 %v832
          %v865 = vunpack.c.l.b16 %v833
          %v866 = vunpack.c.l.b16 %v834
          %v867 = vunpack.c.l.b16 %v835
          %v868 = vunpack.c.l.b16 %v836
          %v869 = vunpack.c.l.b16 %v837
          %v870 = vunpack.c.l.b16 %v838
          %v871 = vpack.c.b16 %v856, %v855
          %v872 = vpack.c.b16 %v858, %v857
          %v873 = vpack.c.b16 %v860, %v859
          %v874 = vpack.c.b16 %v862, %v861
          %v875 = vpack.c.b16 %v864, %v863
          %v876 = vpack.c.b16 %v866, %v865
          %v877 = vpack.c.b16 %v868, %v867
          %v878 = vpack.c.b16 %v870, %v869
          %887 = vmatprep.subr.bf16.mxu0 0
          %888 = vmatpush1.bf16.msra.mxu0 %v878
          %889 = vmatprep.subr.bf16.mxu0 0
          %890 = vmatpush1.bf16.msra.mxu0 %v877
          %891 = vmatprep.subr.bf16.mxu0 0
          %892 = vmatpush1.bf16.msra.mxu0 %v876
          %893 = vmatprep.subr.bf16.mxu0 0
          %894 = vmatpush1.bf16.msra.mxu0 %v875
          %895 = vmatprep.subr.bf16.mxu0 0
          %896 = vmatpush1.bf16.msra.mxu0 %v874
          %897 = vmatprep.subr.bf16.mxu0 0
          %898 = vmatpush1.bf16.msra.mxu0 %v873
          %899 = vmatprep.subr.bf16.mxu0 0
          %900 = vmatpush1.bf16.msra.mxu0 %v872
          %901 = vmatprep.subr.bf16.mxu0 0
          %902 = vmatpush1.bf16.msra.mxu0 %v871
          %903 = vmatprep.subr.bf16.mxu0 0
          %904 = vmatpush2.bf16.msra.mxu0 0
          %905 = vmatprep.subr.bf16.mxu0 0
          %906 = vmatpush2.bf16.msra.mxu0 0
          %907 = vmatprep.subr.bf16.mxu0 0
          %908 = vmatpush2.bf16.msra.mxu0 0
          %909 = vmatprep.subr.bf16.mxu0 0
          %910 = vmatpush2.bf16.msra.mxu0 0
          %911 = vmatprep.subr.bf16.mxu0 0
          %912 = vmatpush2.bf16.msra.mxu0 0
          %913 = vmatprep.subr.bf16.mxu0 0
          %914 = vmatpush2.bf16.msra.mxu0 0
          %915 = vmatprep.subr.bf16.mxu0 0
          %916 = vmatpush2.bf16.msra.mxu0 0
          %917 = vmatprep.subr.bf16.mxu0 0
          %918 = vmatpush2.bf16.msra.mxu0 0
          %919 = vmatprep.mubr.bf16.mxu0 0
          %920 = vmatmul.mubr.bf16.gmra.mxu0 %v815
          %v921 = vpop.f32.mrf.mxu0
          %v922 = vadd.f32 0.0, %v921
          %v923 = vpop.f32.mrf.mxu0
          %v924 = vpop.f32.mrf.mxu0
          %v925 = vadd.f32 0.0, %v924
          %v926 = vpop.f32.mrf.mxu0
          %927 = vmatprep.mubr.bf16.mxu0 0
          %928 = vmatmul.mubr.bf16.gmra.mxu0 %v816
          %v929 = vpop.f32.mrf.mxu0
          %v930 = vadd.f32 0.0, %v929
          %v931 = vpop.f32.mrf.mxu0
          %v932 = vpop.f32.mrf.mxu0
          %v933 = vadd.f32 0.0, %v932
          %v934 = vpop.f32.mrf.mxu0
          %935 = vmatprep.mubr.bf16.mxu0 0
          %936 = vmatmul.mubr.bf16.gmra.mxu0 %v817
          %v937 = vpop.f32.mrf.mxu0
          %v938 = vadd.f32 0.0, %v937
          %v939 = vpop.f32.mrf.mxu0
          %v940 = vpop.f32.mrf.mxu0
          %v941 = vadd.f32 0.0, %v940
          %v942 = vpop.f32.mrf.mxu0
          %943 = vmatprep.mubr.bf16.mxu0 0
          %944 = vmatmul.mubr.bf16.gmra.mxu0 %v818
          %v945 = vpop.f32.mrf.mxu0
          %v946 = vadd.f32 0.0, %v945
          %v947 = vpop.f32.mrf.mxu0
          %v948 = vpop.f32.mrf.mxu0
          %v949 = vadd.f32 0.0, %v948
          %v950 = vpop.f32.mrf.mxu0
          %951 = vmatprep.mubr.bf16.mxu0 0
          %952 = vmatmul.mubr.bf16.gmra.mxu0 %v819
          %v953 = vpop.f32.mrf.mxu0
          %v954 = vadd.f32 0.0, %v953
          %v955 = vpop.f32.mrf.mxu0
          %v956 = vpop.f32.mrf.mxu0
          %v957 = vadd.f32 0.0, %v956
          %v958 = vpop.f32.mrf.mxu0
          %959 = vmatprep.mubr.bf16.mxu0 0
          %960 = vmatmul.mubr.bf16.gmra.mxu0 %v820
          %v961 = vpop.f32.mrf.mxu0
          %v962 = vadd.f32 0.0, %v961
          %v963 = vpop.f32.mrf.mxu0
          %v964 = vpop.f32.mrf.mxu0
          %v965 = vadd.f32 0.0, %v964
          %v966 = vpop.f32.mrf.mxu0
          %967 = vmatprep.mubr.bf16.mxu0 0
          %968 = vmatmul.mubr.bf16.gmra.mxu0 %v821
          %v969 = vpop.f32.mrf.mxu0
          %v970 = vadd.f32 0.0, %v969
          %v971 = vpop.f32.mrf.mxu0
          %v972 = vpop.f32.mrf.mxu0
          %v973 = vadd.f32 0.0, %v972
          %v974 = vpop.f32.mrf.mxu0
          %975 = vmatprep.mubr.bf16.mxu0 0
          %976 = vmatmul.mubr.bf16.gmra.mxu0 %v822
          %v977 = vpop.f32.mrf.mxu0
          %v978 = vadd.f32 0.0, %v977
          %v979 = vpop.f32.mrf.mxu0
          %v980 = vpop.f32.mrf.mxu0
          %v981 = vadd.f32 0.0, %v980
          %v982 = vpop.f32.mrf.mxu0
          %983 = vdwg.mxu0
          %v984 = vmax.f32 %v922, 0.0
          %v985 = vmax.f32 %v925, 0.0
          %v986 = vmax.f32 %v930, 0.0
          %v987 = vmax.f32 %v933, 0.0
          %v988 = vmax.f32 %v938, 0.0
          %v989 = vmax.f32 %v941, 0.0
          %v990 = vmax.f32 %v946, 0.0
          %v991 = vmax.f32 %v949, 0.0
          %v992 = vmax.f32 %v954, 0.0
          %v993 = vmax.f32 %v957, 0.0
          %v994 = vmax.f32 %v962, 0.0
          %v995 = vmax.f32 %v965, 0.0
          %v996 = vmax.f32 %v970, 0.0
          %v997 = vmax.f32 %v973, 0.0
          %v998 = vmax.f32 %v978, 0.0
          %v999 = vmax.f32 %v981, 0.0
          %v1000 = vld [vmem:[%s426] sm:$0xff]
          %v1001 = vld [vmem:[%s426 + $0x8] sm:$0xff]
          %v1002 = vld [vmem:[%s426 + $0x10] sm:$0xff]
          %v1003 = vld [vmem:[%s426 + $0x18] sm:$0xff]
          %v1004 = vld [vmem:[%s426 + $0x20] sm:$0xff]
          %v1005 = vld [vmem:[%s426 + $0x28] sm:$0xff]
          %v1006 = vld [vmem:[%s426 + $0x30] sm:$0xff]
          %v1007 = vld [vmem:[%s426 + $0x38] sm:$0xff]
          %v1008 = vld [vmem:[%s426 + $0x40] sm:$0xff]
          %v1009 = vld [vmem:[%s426 + $0x48] sm:$0xff]
          %v1010 = vld [vmem:[%s426 + $0x50] sm:$0xff]
          %v1011 = vld [vmem:[%s426 + $0x58] sm:$0xff]
          %v1012 = vld [vmem:[%s426 + $0x60] sm:$0xff]
          %v1013 = vld [vmem:[%s426 + $0x68] sm:$0xff]
          %v1014 = vld [vmem:[%s426 + $0x70] sm:$0xff]
          %v1015 = vld [vmem:[%s426 + $0x78] sm:$0xff]
          %v1016 = vmul.f32 %v984, %v1000
          %v1017 = vmul.f32 %v985, %v1001
          %v1018 = vmul.f32 %v986, %v1002
          %v1019 = vmul.f32 %v987, %v1003
          %v1020 = vmul.f32 %v988, %v1004
          %v1021 = vmul.f32 %v989, %v1005
          %v1022 = vmul.f32 %v990, %v1006
          %v1023 = vmul.f32 %v991, %v1007
          %v1024 = vmul.f32 %v992, %v1008
          %v1025 = vmul.f32 %v993, %v1009
          %v1026 = vmul.f32 %v994, %v1010
          %v1027 = vmul.f32 %v995, %v1011
          %v1028 = vmul.f32 %v996, %v1012
          %v1029 = vmul.f32 %v997, %v1013
          %v1030 = vmul.f32 %v998, %v1014
          %v1031 = vmul.f32 %v999, %v1015
          %v1032 = vpack.c.bf16 %v1017, %v1016
          %v1033 = vpack.c.bf16 %v1019, %v1018
          %v1034 = vpack.c.bf16 %v1021, %v1020
          %v1035 = vpack.c.bf16 %v1023, %v1022
          %v1036 = vpack.c.bf16 %v1025, %v1024
          %v1037 = vpack.c.bf16 %v1027, %v1026
          %v1038 = vpack.c.bf16 %v1029, %v1028
          %v1039 = vpack.c.bf16 %v1031, %v1030
          %v1048 = vunpack.c.l.b16 %v1032
          %v1049 = vunpack.c.h.b16 %v1032
          %v1050 = vunpack.c.l.b16 %v1033
          %v1051 = vunpack.c.h.b16 %v1033
          %v1052 = vunpack.c.l.b16 %v1034
          %v1053 = vunpack.c.h.b16 %v1034
          %v1054 = vunpack.c.l.b16 %v1035
          %v1055 = vunpack.c.h.b16 %v1035
          %v1056 = vunpack.c.l.b16 %v1036
          %v1057 = vunpack.c.h.b16 %v1036
          %v1058 = vunpack.c.l.b16 %v1037
          %v1059 = vunpack.c.h.b16 %v1037
          %v1060 = vunpack.c.l.b16 %v1038
          %v1061 = vunpack.c.h.b16 %v1038
          %v1062 = vunpack.c.l.b16 %v1039
          %v1063 = vunpack.c.h.b16 %v1039
          %v1064 = vpack.c.b16 %v1048, %v1048
          %v1065 = vpack.c.b16 %v1049, %v1049
          %v1066 = vpack.c.b16 %v1050, %v1050
          %v1067 = vpack.c.b16 %v1051, %v1051
          %v1068 = vpack.c.b16 %v1052, %v1052
          %v1069 = vpack.c.b16 %v1053, %v1053
          %v1070 = vpack.c.b16 %v1054, %v1054
          %v1071 = vpack.c.b16 %v1055, %v1055
          %v1072 = vpack.c.b16 %v1056, %v1056
          %v1073 = vpack.c.b16 %v1057, %v1057
          %v1074 = vpack.c.b16 %v1058, %v1058
          %v1075 = vpack.c.b16 %v1059, %v1059
          %v1076 = vpack.c.b16 %v1060, %v1060
          %v1077 = vpack.c.b16 %v1061, %v1061
          %v1078 = vpack.c.b16 %v1062, %v1062
          %v1079 = vpack.c.b16 %v1063, %v1063
          %s1096 = sshra.s32 %s489, 3
          %s1097 = sand.u32 %s489, 7
          %s1098 = smul.addr %s1096, 4
          %s1099 = scalar_lea.vmem [#allocation2], %s1098
          %1100 = vst [vmem:[%s1099] sm:$0xf] %v1064
          %1101 = vst [vmem:[%s1099 + $0x4] sm:$0xf] %v1065
          %1102 = vst [vmem:[%s1099 + $0x8] sm:$0xf] %v1066
          %1103 = vst [vmem:[%s1099 + $0xc] sm:$0xf] %v1067
          %1104 = vst [vmem:[%s1099 + $0x10] sm:$0xf] %v1068
          %1105 = vst [vmem:[%s1099 + $0x14] sm:$0xf] %v1069
          %1106 = vst [vmem:[%s1099 + $0x18] sm:$0xf] %v1070
          %1107 = vst [vmem:[%s1099 + $0x1c] sm:$0xf] %v1071
          %1108 = vst [vmem:[%s1099 + $0x20] sm:$0xf] %v1072
          %1109 = vst [vmem:[%s1099 + $0x24] sm:$0xf] %v1073
          %1110 = vst [vmem:[%s1099 + $0x28] sm:$0xf] %v1074
          %1111 = vst [vmem:[%s1099 + $0x2c] sm:$0xf] %v1075
          %1112 = vst [vmem:[%s1099 + $0x30] sm:$0xf] %v1076
          %1113 = vst [vmem:[%s1099 + $0x34] sm:$0xf] %v1077
          %1114 = vst [vmem:[%s1099 + $0x38] sm:$0xf] %v1078
          %1115 = vst [vmem:[%s1099 + $0x3c] sm:$0xf] %v1079
          %v1116 = vld [vmem:[%s435] sm:$0xff]
          %v1117 = vld [vmem:[%s435 + $0x8] sm:$0xff]
          %v1118 = vld [vmem:[%s435 + $0x10] sm:$0xff]
          %v1119 = vld [vmem:[%s435 + $0x18] sm:$0xff]
          %v1120 = vld [vmem:[%s435 + $0x20] sm:$0xff]
          %v1121 = vld [vmem:[%s435 + $0x28] sm:$0xff]
          %v1122 = vld [vmem:[%s435 + $0x30] sm:$0xff]
          %v1123 = vld [vmem:[%s435 + $0x38] sm:$0xff]
          %v1124 = vld [vmem:[%s435 + $0x40] sm:$0xff]
          %v1125 = vld [vmem:[%s435 + $0x48] sm:$0xff]
          %v1126 = vld [vmem:[%s435 + $0x50] sm:$0xff]
          %v1127 = vld [vmem:[%s435 + $0x58] sm:$0xff]
          %v1128 = vld [vmem:[%s435 + $0x60] sm:$0xff]
          %v1129 = vld [vmem:[%s435 + $0x68] sm:$0xff]
          %v1130 = vld [vmem:[%s435 + $0x70] sm:$0xff]
          %v1131 = vld [vmem:[%s435 + $0x78] sm:$0xff]
          %v1132 = vmul.f32 %v984, %v1116
          %v1133 = vmul.f32 %v985, %v1117
          %v1134 = vmul.f32 %v986, %v1118
          %v1135 = vmul.f32 %v987, %v1119
          %v1136 = vmul.f32 %v988, %v1120
          %v1137 = vmul.f32 %v989, %v1121
          %v1138 = vmul.f32 %v990, %v1122
          %v1139 = vmul.f32 %v991, %v1123
          %v1140 = vmul.f32 %v992, %v1124
          %v1141 = vmul.f32 %v993, %v1125
          %v1142 = vmul.f32 %v994, %v1126
          %v1143 = vmul.f32 %v995, %v1127
          %v1144 = vmul.f32 %v996, %v1128
          %v1145 = vmul.f32 %v997, %v1129
          %v1146 = vmul.f32 %v998, %v1130
          %v1147 = vmul.f32 %v999, %v1131
          %v1148 = vpack.c.bf16 %v1133, %v1132
          %v1149 = vpack.c.bf16 %v1135, %v1134
          %v1150 = vpack.c.bf16 %v1137, %v1136
          %v1151 = vpack.c.bf16 %v1139, %v1138
          %v1152 = vpack.c.bf16 %v1141, %v1140
          %v1153 = vpack.c.bf16 %v1143, %v1142
          %v1154 = vpack.c.bf16 %v1145, %v1144
          %v1155 = vpack.c.bf16 %v1147, %v1146
          %v1164 = vunpack.c.l.b16 %v1148
          %v1165 = vunpack.c.h.b16 %v1148
          %v1166 = vunpack.c.l.b16 %v1149
          %v1167 = vunpack.c.h.b16 %v1149
          %v1168 = vunpack.c.l.b16 %v1150
          %v1169 = vunpack.c.h.b16 %v1150
          %v1170 = vunpack.c.l.b16 %v1151
          %v1171 = vunpack.c.h.b16 %v1151
          %v1172 = vunpack.c.l.b16 %v1152
          %v1173 = vunpack.c.h.b16 %v1152
          %v1174 = vunpack.c.l.b16 %v1153
          %v1175 = vunpack.c.h.b16 %v1153
          %v1176 = vunpack.c.l.b16 %v1154
          %v1177 = vunpack.c.h.b16 %v1154
          %v1178 = vunpack.c.l.b16 %v1155
          %v1179 = vunpack.c.h.b16 %v1155
          %v1180 = vpack.c.b16 %v1164, %v1164
          %v1181 = vpack.c.b16 %v1165, %v1165
          %v1182 = vpack.c.b16 %v1166, %v1166
          %v1183 = vpack.c.b16 %v1167, %v1167
          %v1184 = vpack.c.b16 %v1168, %v1168
          %v1185 = vpack.c.b16 %v1169, %v1169
          %v1186 = vpack.c.b16 %v1170, %v1170
          %v1187 = vpack.c.b16 %v1171, %v1171
          %v1188 = vpack.c.b16 %v1172, %v1172
          %v1189 = vpack.c.b16 %v1173, %v1173
          %v1190 = vpack.c.b16 %v1174, %v1174
          %v1191 = vpack.c.b16 %v1175, %v1175
          %v1192 = vpack.c.b16 %v1176, %v1176
          %v1193 = vpack.c.b16 %v1177, %v1177
          %v1194 = vpack.c.b16 %v1178, %v1178
          %v1195 = vpack.c.b16 %v1179, %v1179
          %s1212 = smul.addr %s1096, 4
          %s1213 = scalar_lea.vmem [#allocation3], %s1212
          %1214 = vst [vmem:[%s1213] sm:$0xf] %v1180
          %1215 = vst [vmem:[%s1213 + $0x4] sm:$0xf] %v1181
          %1216 = vst [vmem:[%s1213 + $0x8] sm:$0xf] %v1182
          %1217 = vst [vmem:[%s1213 + $0xc] sm:$0xf] %v1183
          %1218 = vst [vmem:[%s1213 + $0x10] sm:$0xf] %v1184
          %1219 = vst [vmem:[%s1213 + $0x14] sm:$0xf] %v1185
          %1220 = vst [vmem:[%s1213 + $0x18] sm:$0xf] %v1186
          %1221 = vst [vmem:[%s1213 + $0x1c] sm:$0xf] %v1187
          %1222 = vst [vmem:[%s1213 + $0x20] sm:$0xf] %v1188
          %1223 = vst [vmem:[%s1213 + $0x24] sm:$0xf] %v1189
          %1224 = vst [vmem:[%s1213 + $0x28] sm:$0xf] %v1190
          %1225 = vst [vmem:[%s1213 + $0x2c] sm:$0xf] %v1191
          %1226 = vst [vmem:[%s1213 + $0x30] sm:$0xf] %v1192
          %1227 = vst [vmem:[%s1213 + $0x34] sm:$0xf] %v1193
          %1228 = vst [vmem:[%s1213 + $0x38] sm:$0xf] %v1194
          %1229 = vst [vmem:[%s1213 + $0x3c] sm:$0xf] %v1195
          %1230 = vst [vmem:[%s475] sm:$0xff] 0.0
          %1231 = vst [vmem:[%s475 + $0x8] sm:$0xff] 0.0
          %1232 = vst [vmem:[%s475 + $0x10] sm:$0xff] 0.0
          %1233 = vst [vmem:[%s475 + $0x18] sm:$0xff] 0.0
          %1234 = vst [vmem:[%s475 + $0x20] sm:$0xff] 0.0
          %1235 = vst [vmem:[%s475 + $0x28] sm:$0xff] 0.0
          %1236 = vst [vmem:[%s475 + $0x30] sm:$0xff] 0.0
          %1237 = vst [vmem:[%s475 + $0x38] sm:$0xff] 0.0
          %1238 = vst [vmem:[%s475 + $0x40] sm:$0xff] 0.0
          %1239 = vst [vmem:[%s475 + $0x48] sm:$0xff] 0.0
          %1240 = vst [vmem:[%s475 + $0x50] sm:$0xff] 0.0
          %1241 = vst [vmem:[%s475 + $0x58] sm:$0xff] 0.0
          %1242 = vst [vmem:[%s475 + $0x60] sm:$0xff] 0.0
          %1243 = vst [vmem:[%s475 + $0x68] sm:$0xff] 0.0
          %1244 = vst [vmem:[%s475 + $0x70] sm:$0xff] 0.0
          %1245 = vst [vmem:[%s475 + $0x78] sm:$0xff] 0.0
          %1246 = vst [vmem:[%s482] sm:$0xff] 0.0
          %1247 = vst [vmem:[%s482 + $0x8] sm:$0xff] 0.0
          %1248 = vst [vmem:[%s482 + $0x10] sm:$0xff] 0.0
          %1249 = vst [vmem:[%s482 + $0x18] sm:$0xff] 0.0
          %1250 = vst [vmem:[%s482 + $0x20] sm:$0xff] 0.0
          %1251 = vst [vmem:[%s482 + $0x28] sm:$0xff] 0.0
          %1252 = vst [vmem:[%s482 + $0x30] sm:$0xff] 0.0
          %1253 = vst [vmem:[%s482 + $0x38] sm:$0xff] 0.0
          %1254 = vst [vmem:[%s482 + $0x40] sm:$0xff] 0.0
          %1255 = vst [vmem:[%s482 + $0x48] sm:$0xff] 0.0
          %1256 = vst [vmem:[%s482 + $0x50] sm:$0xff] 0.0
          %1257 = vst [vmem:[%s482 + $0x58] sm:$0xff] 0.0
          %1258 = vst [vmem:[%s482 + $0x60] sm:$0xff] 0.0
          %1259 = vst [vmem:[%s482 + $0x68] sm:$0xff] 0.0
          %1260 = vst [vmem:[%s482 + $0x70] sm:$0xff] 0.0
          %1261 = vst [vmem:[%s482 + $0x78] sm:$0xff] 0.0
        $region80: #{tpu_custom_call.1} parent=47 // pred_fallthru
          _
        %p1262 = scmp.eq.s32.totalorder %s38, 1
        // Predicated region
        $region81: #{tpu_custom_call.1} parent=47 // pred_check
          %p1263 = pneg %p1262
        $region82: #{tpu_custom_call.1} parent=47 // pred_check_branch
          %1265 = sbr.rel (%p1263) target = $region84
        $region83: #{tpu_custom_call.1} parent=47 // pred_region
          %v1266 = vld [vmem:[#allocation2] sm:$0xf]
          %v1267 = vld [vmem:[#allocation2 + $0x4] sm:$0xf]
          %v1268 = vld [vmem:[#allocation2 + $0x8] sm:$0xf]
          %v1269 = vld [vmem:[#allocation2 + $0xc] sm:$0xf]
          %v1270 = vld [vmem:[#allocation2 + $0x10] sm:$0xf]
          %v1271 = vld [vmem:[#allocation2 + $0x14] sm:$0xf]
          %v1272 = vld [vmem:[#allocation2 + $0x18] sm:$0xf]
          %v1273 = vld [vmem:[#allocation2 + $0x1c] sm:$0xf]
          %v1274 = vld [vmem:[#allocation2 + $0x20] sm:$0xf]
          %v1275 = vld [vmem:[#allocation2 + $0x24] sm:$0xf]
          %v1276 = vld [vmem:[#allocation2 + $0x28] sm:$0xf]
          %v1277 = vld [vmem:[#allocation2 + $0x2c] sm:$0xf]
          %v1278 = vld [vmem:[#allocation2 + $0x30] sm:$0xf]
          %v1279 = vld [vmem:[#allocation2 + $0x34] sm:$0xf]
          %v1280 = vld [vmem:[#allocation2 + $0x38] sm:$0xf]
          %v1281 = vld [vmem:[#allocation2 + $0x3c] sm:$0xf]
          %v1282 = vld [vmem:[#allocation2 + $0x40] sm:$0xf]
          %v1283 = vld [vmem:[#allocation2 + $0x44] sm:$0xf]
          %v1284 = vld [vmem:[#allocation2 + $0x48] sm:$0xf]
          %v1285 = vld [vmem:[#allocation2 + $0x4c] sm:$0xf]
          %v1286 = vld [vmem:[#allocation2 + $0x50] sm:$0xf]
          %v1287 = vld [vmem:[#allocation2 + $0x54] sm:$0xf]
          %v1288 = vld [vmem:[#allocation2 + $0x58] sm:$0xf]
          %v1289 = vld [vmem:[#allocation2 + $0x5c] sm:$0xf]
          %v1290 = vld [vmem:[#allocation2 + $0x60] sm:$0xf]
          %v1291 = vld [vmem:[#allocation2 + $0x64] sm:$0xf]
          %v1292 = vld [vmem:[#allocation2 + $0x68] sm:$0xf]
          %v1293 = vld [vmem:[#allocation2 + $0x6c] sm:$0xf]
          %v1294 = vld [vmem:[#allocation2 + $0x70] sm:$0xf]
          %v1295 = vld [vmem:[#allocation2 + $0x74] sm:$0xf]
          %v1296 = vld [vmem:[#allocation2 + $0x78] sm:$0xf]
          %v1297 = vld [vmem:[#allocation2 + $0x7c] sm:$0xf]
          %v1314 = vunpack.c.l.b16 %v490
          %v1315 = vunpack.c.h.b16 %v490
          %v1316 = vunpack.c.l.b16 %v491
          %v1317 = vunpack.c.h.b16 %v491
          %v1318 = vunpack.c.l.b16 %v492
          %v1319 = vunpack.c.h.b16 %v492
          %v1320 = vunpack.c.l.b16 %v493
          %v1321 = vunpack.c.h.b16 %v493
          %v1322 = vunpack.c.l.b16 %v494
          %v1323 = vunpack.c.h.b16 %v494
          %v1324 = vunpack.c.l.b16 %v495
          %v1325 = vunpack.c.h.b16 %v495
          %v1326 = vunpack.c.l.b16 %v496
          %v1327 = vunpack.c.h.b16 %v496
          %v1328 = vunpack.c.l.b16 %v497
          %v1329 = vunpack.c.h.b16 %v497
          %v1330 = vunpack.c.l.b16 %v498
          %v1331 = vunpack.c.h.b16 %v498
          %v1332 = vunpack.c.l.b16 %v499
          %v1333 = vunpack.c.h.b16 %v499
          %v1334 = vunpack.c.l.b16 %v500
          %v1335 = vunpack.c.h.b16 %v500
          %v1336 = vunpack.c.l.b16 %v501
          %v1337 = vunpack.c.h.b16 %v501
          %v1338 = vunpack.c.l.b16 %v502
          %v1339 = vunpack.c.h.b16 %v502
          %v1340 = vunpack.c.l.b16 %v503
          %v1341 = vunpack.c.h.b16 %v503
          %v1342 = vunpack.c.l.b16 %v504
          %v1343 = vunpack.c.h.b16 %v504
          %v1344 = vunpack.c.l.b16 %v505
          %v1345 = vunpack.c.h.b16 %v505
          %v1346 = vpack.c.b16 %v1316, %v1314
          %v1347 = vpack.c.b16 %v1317, %v1315
          %v1348 = vpack.c.b16 %v1320, %v1318
          %v1349 = vpack.c.b16 %v1321, %v1319
          %v1350 = vpack.c.b16 %v1324, %v1322
          %v1351 = vpack.c.b16 %v1325, %v1323
          %v1352 = vpack.c.b16 %v1328, %v1326
          %v1353 = vpack.c.b16 %v1329, %v1327
          %v1354 = vpack.c.b16 %v1332, %v1330
          %v1355 = vpack.c.b16 %v1333, %v1331
          %v1356 = vpack.c.b16 %v1336, %v1334
          %v1357 = vpack.c.b16 %v1337, %v1335
          %v1358 = vpack.c.b16 %v1340, %v1338
          %v1359 = vpack.c.b16 %v1341, %v1339
          %v1360 = vpack.c.b16 %v1344, %v1342
          %v1361 = vpack.c.b16 %v1345, %v1343
          %v1410 = vunpack.c.l.b16 %v1266
          %v1411 = vunpack.c.l.b16 %v1267
          %v1412 = vunpack.c.l.b16 %v1268
          %v1413 = vunpack.c.l.b16 %v1269
          %v1414 = vunpack.c.l.b16 %v1270
          %v1415 = vunpack.c.l.b16 %v1271
          %v1416 = vunpack.c.l.b16 %v1272
          %v1417 = vunpack.c.l.b16 %v1273
          %v1418 = vunpack.c.l.b16 %v1274
          %v1419 = vunpack.c.l.b16 %v1275
          %v1420 = vunpack.c.l.b16 %v1276
          %v1421 = vunpack.c.l.b16 %v1277
          %v1422 = vunpack.c.l.b16 %v1278
          %v1423 = vunpack.c.l.b16 %v1279
          %v1424 = vunpack.c.l.b16 %v1280
          %v1425 = vunpack.c.l.b16 %v1281
          %v1426 = vunpack.c.l.b16 %v1282
          %v1427 = vunpack.c.l.b16 %v1283
          %v1428 = vunpack.c.l.b16 %v1284
          %v1429 = vunpack.c.l.b16 %v1285
          %v1430 = vunpack.c.l.b16 %v1286
          %v1431 = vunpack.c.l.b16 %v1287
          %v1432 = vunpack.c.l.b16 %v1288
          %v1433 = vunpack.c.l.b16 %v1289
          %v1434 = vunpack.c.l.b16 %v1290
          %v1435 = vunpack.c.l.b16 %v1291
          %v1436 = vunpack.c.l.b16 %v1292
          %v1437 = vunpack.c.l.b16 %v1293
          %v1438 = vunpack.c.l.b16 %v1294
          %v1439 = vunpack.c.l.b16 %v1295
          %v1440 = vunpack.c.l.b16 %v1296
          %v1441 = vunpack.c.l.b16 %v1297
          %v1442 = vpack.c.b16 %v1411, %v1410
          %v1443 = vpack.c.b16 %v1413, %v1412
          %v1444 = vpack.c.b16 %v1415, %v1414
          %v1445 = vpack.c.b16 %v1417, %v1416
          %v1446 = vpack.c.b16 %v1419, %v1418
          %v1447 = vpack.c.b16 %v1421, %v1420
          %v1448 = vpack.c.b16 %v1423, %v1422
          %v1449 = vpack.c.b16 %v1425, %v1424
          %v1450 = vpack.c.b16 %v1427, %v1426
          %v1451 = vpack.c.b16 %v1429, %v1428
          %v1452 = vpack.c.b16 %v1431, %v1430
          %v1453 = vpack.c.b16 %v1433, %v1432
          %v1454 = vpack.c.b16 %v1435, %v1434
          %v1455 = vpack.c.b16 %v1437, %v1436
          %v1456 = vpack.c.b16 %v1439, %v1438
          %v1457 = vpack.c.b16 %v1441, %v1440
          %1474 = vmatprep.subr.bf16.mxu0 0
          %1475 = vmatpush1.bf16.msra.mxu0 %v1449
          %1476 = vmatprep.subr.bf16.mxu0 0
          %1477 = vmatpush1.bf16.msra.mxu0 %v1448
          %1478 = vmatprep.subr.bf16.mxu0 0
          %1479 = vmatpush1.bf16.msra.mxu0 %v1447
          %1480 = vmatprep.subr.bf16.mxu0 0
          %1481 = vmatpush1.bf16.msra.mxu0 %v1446
          %1482 = vmatprep.subr.bf16.mxu0 0
          %1483 = vmatpush1.bf16.msra.mxu0 %v1445
          %1484 = vmatprep.subr.bf16.mxu0 0
          %1485 = vmatpush1.bf16.msra.mxu0 %v1444
          %1486 = vmatprep.subr.bf16.mxu0 0
          %1487 = vmatpush1.bf16.msra.mxu0 %v1443
          %1488 = vmatprep.subr.bf16.mxu0 0
          %1489 = vmatpush1.bf16.msra.mxu0 %v1442
          %1490 = vmatprep.subr.bf16.mxu0 0
          %1491 = vmatpush2.bf16.msra.mxu0 %v1457
          %1492 = vmatprep.subr.bf16.mxu0 0
          %1493 = vmatpush2.bf16.msra.mxu0 %v1456
          %1494 = vmatprep.subr.bf16.mxu0 0
          %1495 = vmatpush2.bf16.msra.mxu0 %v1455
          %1496 = vmatprep.subr.bf16.mxu0 0
          %1497 = vmatpush2.bf16.msra.mxu0 %v1454
          %1498 = vmatprep.subr.bf16.mxu0 0
          %1499 = vmatpush2.bf16.msra.mxu0 %v1453
          %1500 = vmatprep.subr.bf16.mxu0 0
          %1501 = vmatpush2.bf16.msra.mxu0 %v1452
          %1502 = vmatprep.subr.bf16.mxu0 0
          %1503 = vmatpush2.bf16.msra.mxu0 %v1451
          %1504 = vmatprep.subr.bf16.mxu0 0
          %1505 = vmatpush2.bf16.msra.mxu0 %v1450
          %1506 = vmatprep.mubr.bf16.mxu0 %v1347
          %1507 = vmatmul.mubr.bf16.gmra.mxu0 %v1346
          %v1508 = vpop.f32.mrf.mxu0
          %v1509 = vadd.f32 0.0, %v1508
          %v1510 = vpop.f32.mrf.mxu0
          %v1511 = vpop.f32.mrf.mxu0
          %v1512 = vadd.f32 0.0, %v1511
          %v1513 = vpop.f32.mrf.mxu0
          %1514 = vmatprep.mubr.bf16.mxu0 %v1349
          %1515 = vmatmul.mubr.bf16.gmra.mxu0 %v1348
          %v1516 = vpop.f32.mrf.mxu0
          %v1517 = vadd.f32 0.0, %v1516
          %v1518 = vpop.f32.mrf.mxu0
          %v1519 = vpop.f32.mrf.mxu0
          %v1520 = vadd.f32 0.0, %v1519
          %v1521 = vpop.f32.mrf.mxu0
          %1522 = vmatprep.mubr.bf16.mxu0 %v1351
          %1523 = vmatmul.mubr.bf16.gmra.mxu0 %v1350
          %v1524 = vpop.f32.mrf.mxu0
          %v1525 = vadd.f32 0.0, %v1524
          %v1526 = vpop.f32.mrf.mxu0
          %v1527 = vpop.f32.mrf.mxu0
          %v1528 = vadd.f32 0.0, %v1527
          %v1529 = vpop.f32.mrf.mxu0
          %1530 = vmatprep.mubr.bf16.mxu0 %v1353
          %1531 = vmatmul.mubr.bf16.gmra.mxu0 %v1352
          %v1532 = vpop.f32.mrf.mxu0
          %v1533 = vadd.f32 0.0, %v1532
          %v1534 = vpop.f32.mrf.mxu0
          %v1535 = vpop.f32.mrf.mxu0
          %v1536 = vadd.f32 0.0, %v1535
          %v1537 = vpop.f32.mrf.mxu0
          %1538 = vmatprep.mubr.bf16.mxu0 %v1355
          %1539 = vmatmul.mubr.bf16.gmra.mxu0 %v1354
          %v1540 = vpop.f32.mrf.mxu0
          %v1541 = vadd.f32 0.0, %v1540
          %v1542 = vpop.f32.mrf.mxu0
          %v1543 = vpop.f32.mrf.mxu0
          %v1544 = vadd.f32 0.0, %v1543
          %v1545 = vpop.f32.mrf.mxu0
          %1546 = vmatprep.mubr.bf16.mxu0 %v1357
          %1547 = vmatmul.mubr.bf16.gmra.mxu0 %v1356
          %v1548 = vpop.f32.mrf.mxu0
          %v1549 = vadd.f32 0.0, %v1548
          %v1550 = vpop.f32.mrf.mxu0
          %v1551 = vpop.f32.mrf.mxu0
          %v1552 = vadd.f32 0.0, %v1551
          %v1553 = vpop.f32.mrf.mxu0
          %1554 = vmatprep.mubr.bf16.mxu0 %v1359
          %1555 = vmatmul.mubr.bf16.gmra.mxu0 %v1358
          %v1556 = vpop.f32.mrf.mxu0
          %v1557 = vadd.f32 0.0, %v1556
          %v1558 = vpop.f32.mrf.mxu0
          %v1559 = vpop.f32.mrf.mxu0
          %v1560 = vadd.f32 0.0, %v1559
          %v1561 = vpop.f32.mrf.mxu0
          %1562 = vmatprep.mubr.bf16.mxu0 %v1361
          %1563 = vmatmul.mubr.bf16.gmra.mxu0 %v1360
          %v1564 = vpop.f32.mrf.mxu0
          %v1565 = vadd.f32 0.0, %v1564
          %v1566 = vpop.f32.mrf.mxu0
          %v1567 = vpop.f32.mrf.mxu0
          %v1568 = vadd.f32 0.0, %v1567
          %v1569 = vpop.f32.mrf.mxu0
          %1570 = vdwg.mxu0
          %v1571 = vpack.c.bf16 %v1512, %v1509
          %v1572 = vpack.c.bf16 %v1520, %v1517
          %v1573 = vpack.c.bf16 %v1528, %v1525
          %v1574 = vpack.c.bf16 %v1536, %v1533
          %v1575 = vpack.c.bf16 %v1544, %v1541
          %v1576 = vpack.c.bf16 %v1552, %v1549
          %v1577 = vpack.c.bf16 %v1560, %v1557
          %v1578 = vpack.c.bf16 %v1568, %v1565
          %v1579 = vld [vmem:[#allocation10] sm:$0xf]
          %v1580 = vld [vmem:[#allocation10 + $0x4] sm:$0xf]
          %v1581 = vld [vmem:[#allocation10 + $0x8] sm:$0xf]
          %v1582 = vld [vmem:[#allocation10 + $0xc] sm:$0xf]
          %v1583 = vld [vmem:[#allocation10 + $0x10] sm:$0xf]
          %v1584 = vld [vmem:[#allocation10 + $0x14] sm:$0xf]
          %v1585 = vld [vmem:[#allocation10 + $0x18] sm:$0xf]
          %v1586 = vld [vmem:[#allocation10 + $0x1c] sm:$0xf]
          %v1587 = vld [vmem:[#allocation10 + $0x20] sm:$0xf]
          %v1588 = vld [vmem:[#allocation10 + $0x24] sm:$0xf]
          %v1589 = vld [vmem:[#allocation10 + $0x28] sm:$0xf]
          %v1590 = vld [vmem:[#allocation10 + $0x2c] sm:$0xf]
          %v1591 = vld [vmem:[#allocation10 + $0x30] sm:$0xf]
          %v1592 = vld [vmem:[#allocation10 + $0x34] sm:$0xf]
          %v1593 = vld [vmem:[#allocation10 + $0x38] sm:$0xf]
          %v1594 = vld [vmem:[#allocation10 + $0x3c] sm:$0xf]
          %v1611 = vunpack.c.l.b16 %v1579
          %v1612 = vunpack.c.l.b16 %v1580
          %v1613 = vunpack.c.l.b16 %v1581
          %v1614 = vunpack.c.l.b16 %v1582
          %v1615 = vunpack.c.l.b16 %v1583
          %v1616 = vunpack.c.l.b16 %v1584
          %v1617 = vunpack.c.l.b16 %v1585
          %v1618 = vunpack.c.l.b16 %v1586
          %v1619 = vunpack.c.l.b16 %v1587
          %v1620 = vunpack.c.l.b16 %v1588
          %v1621 = vunpack.c.l.b16 %v1589
          %v1622 = vunpack.c.l.b16 %v1590
          %v1623 = vunpack.c.l.b16 %v1591
          %v1624 = vunpack.c.l.b16 %v1592
          %v1625 = vunpack.c.l.b16 %v1593
          %v1626 = vunpack.c.l.b16 %v1594
          %v1627 = vpack.c.b16 %v1612, %v1611
          %v1628 = vpack.c.b16 %v1614, %v1613
          %v1629 = vpack.c.b16 %v1616, %v1615
          %v1630 = vpack.c.b16 %v1618, %v1617
          %v1631 = vpack.c.b16 %v1620, %v1619
          %v1632 = vpack.c.b16 %v1622, %v1621
          %v1633 = vpack.c.b16 %v1624, %v1623
          %v1634 = vpack.c.b16 %v1626, %v1625
          %1643 = vmatprep.subr.bf16.mxu0 0
          %1644 = vmatpush1.bf16.msra.mxu0 %v1634
          %1645 = vmatprep.subr.bf16.mxu0 0
          %1646 = vmatpush1.bf16.msra.mxu0 %v1633
          %1647 = vmatprep.subr.bf16.mxu0 0
          %1648 = vmatpush1.bf16.msra.mxu0 %v1632
          %1649 = vmatprep.subr.bf16.mxu0 0
          %1650 = vmatpush1.bf16.msra.mxu0 %v1631
          %1651 = vmatprep.subr.bf16.mxu0 0
          %1652 = vmatpush1.bf16.msra.mxu0 %v1630
          %1653 = vmatprep.subr.bf16.mxu0 0
          %1654 = vmatpush1.bf16.msra.mxu0 %v1629
          %1655 = vmatprep.subr.bf16.mxu0 0
          %1656 = vmatpush1.bf16.msra.mxu0 %v1628
          %1657 = vmatprep.subr.bf16.mxu0 0
          %1658 = vmatpush1.bf16.msra.mxu0 %v1627
          %1659 = vmatprep.subr.bf16.mxu0 0
          %1660 = vmatpush2.bf16.msra.mxu0 0
          %1661 = vmatprep.subr.bf16.mxu0 0
          %1662 = vmatpush2.bf16.msra.mxu0 0
          %1663 = vmatprep.subr.bf16.mxu0 0
          %1664 = vmatpush2.bf16.msra.mxu0 0
          %1665 = vmatprep.subr.bf16.mxu0 0
          %1666 = vmatpush2.bf16.msra.mxu0 0
          %1667 = vmatprep.subr.bf16.mxu0 0
          %1668 = vmatpush2.bf16.msra.mxu0 0
          %1669 = vmatprep.subr.bf16.mxu0 0
          %1670 = vmatpush2.bf16.msra.mxu0 0
          %1671 = vmatprep.subr.bf16.mxu0 0
          %1672 = vmatpush2.bf16.msra.mxu0 0
          %1673 = vmatprep.subr.bf16.mxu0 0
          %1674 = vmatpush2.bf16.msra.mxu0 0
          %1675 = vmatprep.mubr.bf16.mxu0 0
          %1676 = vmatmul.mubr.bf16.gmra.mxu0 %v1571
          %v1677 = vpop.f32.mrf.mxu0
          %v1678 = vadd.f32 0.0, %v1677
          %v1679 = vpop.f32.mrf.mxu0
          %v1680 = vpop.f32.mrf.mxu0
          %v1681 = vadd.f32 0.0, %v1680
          %v1682 = vpop.f32.mrf.mxu0
          %1683 = vmatprep.mubr.bf16.mxu0 0
          %1684 = vmatmul.mubr.bf16.gmra.mxu0 %v1572
          %v1685 = vpop.f32.mrf.mxu0
          %v1686 = vadd.f32 0.0, %v1685
          %v1687 = vpop.f32.mrf.mxu0
          %v1688 = vpop.f32.mrf.mxu0
          %v1689 = vadd.f32 0.0, %v1688
          %v1690 = vpop.f32.mrf.mxu0
          %1691 = vmatprep.mubr.bf16.mxu0 0
          %1692 = vmatmul.mubr.bf16.gmra.mxu0 %v1573
          %v1693 = vpop.f32.mrf.mxu0
          %v1694 = vadd.f32 0.0, %v1693
          %v1695 = vpop.f32.mrf.mxu0
          %v1696 = vpop.f32.mrf.mxu0
          %v1697 = vadd.f32 0.0, %v1696
          %v1698 = vpop.f32.mrf.mxu0
          %1699 = vmatprep.mubr.bf16.mxu0 0
          %1700 = vmatmul.mubr.bf16.gmra.mxu0 %v1574
          %v1701 = vpop.f32.mrf.mxu0
          %v1702 = vadd.f32 0.0, %v1701
          %v1703 = vpop.f32.mrf.mxu0
          %v1704 = vpop.f32.mrf.mxu0
          %v1705 = vadd.f32 0.0, %v1704
          %v1706 = vpop.f32.mrf.mxu0
          %1707 = vmatprep.mubr.bf16.mxu0 0
          %1708 = vmatmul.mubr.bf16.gmra.mxu0 %v1575
          %v1709 = vpop.f32.mrf.mxu0
          %v1710 = vadd.f32 0.0, %v1709
          %v1711 = vpop.f32.mrf.mxu0
          %v1712 = vpop.f32.mrf.mxu0
          %v1713 = vadd.f32 0.0, %v1712
          %v1714 = vpop.f32.mrf.mxu0
          %1715 = vmatprep.mubr.bf16.mxu0 0
          %1716 = vmatmul.mubr.bf16.gmra.mxu0 %v1576
          %v1717 = vpop.f32.mrf.mxu0
          %v1718 = vadd.f32 0.0, %v1717
          %v1719 = vpop.f32.mrf.mxu0
          %v1720 = vpop.f32.mrf.mxu0
          %v1721 = vadd.f32 0.0, %v1720
          %v1722 = vpop.f32.mrf.mxu0
          %1723 = vmatprep.mubr.bf16.mxu0 0
          %1724 = vmatmul.mubr.bf16.gmra.mxu0 %v1577
          %v1725 = vpop.f32.mrf.mxu0
          %v1726 = vadd.f32 0.0, %v1725
          %v1727 = vpop.f32.mrf.mxu0
          %v1728 = vpop.f32.mrf.mxu0
          %v1729 = vadd.f32 0.0, %v1728
          %v1730 = vpop.f32.mrf.mxu0
          %1731 = vmatprep.mubr.bf16.mxu0 0
          %1732 = vmatmul.mubr.bf16.gmra.mxu0 %v1578
          %v1733 = vpop.f32.mrf.mxu0
          %v1734 = vadd.f32 0.0, %v1733
          %v1735 = vpop.f32.mrf.mxu0
          %v1736 = vpop.f32.mrf.mxu0
          %v1737 = vadd.f32 0.0, %v1736
          %v1738 = vpop.f32.mrf.mxu0
          %1739 = vdwg.mxu0
          %1740 = vst [vmem:[%s475] sm:$0xff] %v1678
          %1741 = vst [vmem:[%s475 + $0x8] sm:$0xff] %v1681
          %1742 = vst [vmem:[%s475 + $0x10] sm:$0xff] %v1686
          %1743 = vst [vmem:[%s475 + $0x18] sm:$0xff] %v1689
          %1744 = vst [vmem:[%s475 + $0x20] sm:$0xff] %v1694
          %1745 = vst [vmem:[%s475 + $0x28] sm:$0xff] %v1697
          %1746 = vst [vmem:[%s475 + $0x30] sm:$0xff] %v1702
          %1747 = vst [vmem:[%s475 + $0x38] sm:$0xff] %v1705
          %1748 = vst [vmem:[%s475 + $0x40] sm:$0xff] %v1710
          %1749 = vst [vmem:[%s475 + $0x48] sm:$0xff] %v1713
          %1750 = vst [vmem:[%s475 + $0x50] sm:$0xff] %v1718
          %1751 = vst [vmem:[%s475 + $0x58] sm:$0xff] %v1721
          %1752 = vst [vmem:[%s475 + $0x60] sm:$0xff] %v1726
          %1753 = vst [vmem:[%s475 + $0x68] sm:$0xff] %v1729
          %1754 = vst [vmem:[%s475 + $0x70] sm:$0xff] %v1734
          %1755 = vst [vmem:[%s475 + $0x78] sm:$0xff] %v1737
          %v1756 = vld [vmem:[#allocation3] sm:$0xf]
          %v1757 = vld [vmem:[#allocation3 + $0x4] sm:$0xf]
          %v1758 = vld [vmem:[#allocation3 + $0x8] sm:$0xf]
          %v1759 = vld [vmem:[#allocation3 + $0xc] sm:$0xf]
          %v1760 = vld [vmem:[#allocation3 + $0x10] sm:$0xf]
          %v1761 = vld [vmem:[#allocation3 + $0x14] sm:$0xf]
          %v1762 = vld [vmem:[#allocation3 + $0x18] sm:$0xf]
          %v1763 = vld [vmem:[#allocation3 + $0x1c] sm:$0xf]
          %v1764 = vld [vmem:[#allocation3 + $0x20] sm:$0xf]
          %v1765 = vld [vmem:[#allocation3 + $0x24] sm:$0xf]
          %v1766 = vld [vmem:[#allocation3 + $0x28] sm:$0xf]
          %v1767 = vld [vmem:[#allocation3 + $0x2c] sm:$0xf]
          %v1768 = vld [vmem:[#allocation3 + $0x30] sm:$0xf]
          %v1769 = vld [vmem:[#allocation3 + $0x34] sm:$0xf]
          %v1770 = vld [vmem:[#allocation3 + $0x38] sm:$0xf]
          %v1771 = vld [vmem:[#allocation3 + $0x3c] sm:$0xf]
          %v1772 = vld [vmem:[#allocation3 + $0x40] sm:$0xf]
          %v1773 = vld [vmem:[#allocation3 + $0x44] sm:$0xf]
          %v1774 = vld [vmem:[#allocation3 + $0x48] sm:$0xf]
          %v1775 = vld [vmem:[#allocation3 + $0x4c] sm:$0xf]
          %v1776 = vld [vmem:[#allocation3 + $0x50] sm:$0xf]
          %v1777 = vld [vmem:[#allocation3 + $0x54] sm:$0xf]
          %v1778 = vld [vmem:[#allocation3 + $0x58] sm:$0xf]
          %v1779 = vld [vmem:[#allocation3 + $0x5c] sm:$0xf]
          %v1780 = vld [vmem:[#allocation3 + $0x60] sm:$0xf]
          %v1781 = vld [vmem:[#allocation3 + $0x64] sm:$0xf]
          %v1782 = vld [vmem:[#allocation3 + $0x68] sm:$0xf]
          %v1783 = vld [vmem:[#allocation3 + $0x6c] sm:$0xf]
          %v1784 = vld [vmem:[#allocation3 + $0x70] sm:$0xf]
          %v1785 = vld [vmem:[#allocation3 + $0x74] sm:$0xf]
          %v1786 = vld [vmem:[#allocation3 + $0x78] sm:$0xf]
          %v1787 = vld [vmem:[#allocation3 + $0x7c] sm:$0xf]
          %v1820 = vunpack.c.l.b16 %v1756
          %v1821 = vunpack.c.l.b16 %v1757
          %v1822 = vunpack.c.l.b16 %v1758
          %v1823 = vunpack.c.l.b16 %v1759
          %v1824 = vunpack.c.l.b16 %v1760
          %v1825 = vunpack.c.l.b16 %v1761
          %v1826 = vunpack.c.l.b16 %v1762
          %v1827 = vunpack.c.l.b16 %v1763
          %v1828 = vunpack.c.l.b16 %v1764
          %v1829 = vunpack.c.l.b16 %v1765
          %v1830 = vunpack.c.l.b16 %v1766
          %v1831 = vunpack.c.l.b16 %v1767
          %v1832 = vunpack.c.l.b16 %v1768
          %v1833 = vunpack.c.l.b16 %v1769
          %v1834 = vunpack.c.l.b16 %v1770
          %v1835 = vunpack.c.l.b16 %v1771
          %v1836 = vunpack.c.l.b16 %v1772
          %v1837 = vunpack.c.l.b16 %v1773
          %v1838 = vunpack.c.l.b16 %v1774
          %v1839 = vunpack.c.l.b16 %v1775
          %v1840 = vunpack.c.l.b16 %v1776
          %v1841 = vunpack.c.l.b16 %v1777
          %v1842 = vunpack.c.l.b16 %v1778
          %v1843 = vunpack.c.l.b16 %v1779
          %v1844 = vunpack.c.l.b16 %v1780
          %v1845 = vunpack.c.l.b16 %v1781
          %v1846 = vunpack.c.l.b16 %v1782
          %v1847 = vunpack.c.l.b16 %v1783
          %v1848 = vunpack.c.l.b16 %v1784
          %v1849 = vunpack.c.l.b16 %v1785
          %v1850 = vunpack.c.l.b16 %v1786
          %v1851 = vunpack.c.l.b16 %v1787
          %v1852 = vpack.c.b16 %v1821, %v1820
          %v1853 = vpack.c.b16 %v1823, %v1822
          %v1854 = vpack.c.b16 %v1825, %v1824
          %v1855 = vpack.c.b16 %v1827, %v1826
          %v1856 = vpack.c.b16 %v1829, %v1828
          %v1857 = vpack.c.b16 %v1831, %v1830
          %v1858 = vpack.c.b16 %v1833, %v1832
          %v1859 = vpack.c.b16 %v1835, %v1834
          %v1860 = vpack.c.b16 %v1837, %v1836
          %v1861 = vpack.c.b16 %v1839, %v1838
          %v1862 = vpack.c.b16 %v1841, %v1840
          %v1863 = vpack.c.b16 %v1843, %v1842
          %v1864 = vpack.c.b16 %v1845, %v1844
          %v1865 = vpack.c.b16 %v1847, %v1846
          %v1866 = vpack.c.b16 %v1849, %v1848
          %v1867 = vpack.c.b16 %v1851, %v1850
          %1884 = vmatprep.subr.bf16.mxu0 0
          %1885 = vmatpush1.bf16.msra.mxu0 %v1859
          %1886 = vmatprep.subr.bf16.mxu0 0
          %1887 = vmatpush1.bf16.msra.mxu0 %v1858
          %1888 = vmatprep.subr.bf16.mxu0 0
          %1889 = vmatpush1.bf16.msra.mxu0 %v1857
          %1890 = vmatprep.subr.bf16.mxu0 0
          %1891 = vmatpush1.bf16.msra.mxu0 %v1856
          %1892 = vmatprep.subr.bf16.mxu0 0
          %1893 = vmatpush1.bf16.msra.mxu0 %v1855
          %1894 = vmatprep.subr.bf16.mxu0 0
          %1895 = vmatpush1.bf16.msra.mxu0 %v1854
          %1896 = vmatprep.subr.bf16.mxu0 0
          %1897 = vmatpush1.bf16.msra.mxu0 %v1853
          %1898 = vmatprep.subr.bf16.mxu0 0
          %1899 = vmatpush1.bf16.msra.mxu0 %v1852
          %1900 = vmatprep.subr.bf16.mxu0 0
          %1901 = vmatpush2.bf16.msra.mxu0 %v1867
          %1902 = vmatprep.subr.bf16.mxu0 0
          %1903 = vmatpush2.bf16.msra.mxu0 %v1866
          %1904 = vmatprep.subr.bf16.mxu0 0
          %1905 = vmatpush2.bf16.msra.mxu0 %v1865
          %1906 = vmatprep.subr.bf16.mxu0 0
          %1907 = vmatpush2.bf16.msra.mxu0 %v1864
          %1908 = vmatprep.subr.bf16.mxu0 0
          %1909 = vmatpush2.bf16.msra.mxu0 %v1863
          %1910 = vmatprep.subr.bf16.mxu0 0
          %1911 = vmatpush2.bf16.msra.mxu0 %v1862
          %1912 = vmatprep.subr.bf16.mxu0 0
          %1913 = vmatpush2.bf16.msra.mxu0 %v1861
          %1914 = vmatprep.subr.bf16.mxu0 0
          %1915 = vmatpush2.bf16.msra.mxu0 %v1860
          %1916 = vmatprep.mubr.bf16.mxu0 %v1347
          %1917 = vmatmul.mubr.bf16.gmra.mxu0 %v1346
          %v1918 = vpop.f32.mrf.mxu0
          %v1919 = vadd.f32 0.0, %v1918
          %v1920 = vpop.f32.mrf.mxu0
          %v1921 = vpop.f32.mrf.mxu0
          %v1922 = vadd.f32 0.0, %v1921
          %v1923 = vpop.f32.mrf.mxu0
          %1924 = vmatprep.mubr.bf16.mxu0 %v1349
          %1925 = vmatmul.mubr.bf16.gmra.mxu0 %v1348
          %v1926 = vpop.f32.mrf.mxu0
          %v1927 = vadd.f32 0.0, %v1926
          %v1928 = vpop.f32.mrf.mxu0
          %v1929 = vpop.f32.mrf.mxu0
          %v1930 = vadd.f32 0.0, %v1929
          %v1931 = vpop.f32.mrf.mxu0
          %1932 = vmatprep.mubr.bf16.mxu0 %v1351
          %1933 = vmatmul.mubr.bf16.gmra.mxu0 %v1350
          %v1934 = vpop.f32.mrf.mxu0
          %v1935 = vadd.f32 0.0, %v1934
          %v1936 = vpop.f32.mrf.mxu0
          %v1937 = vpop.f32.mrf.mxu0
          %v1938 = vadd.f32 0.0, %v1937
          %v1939 = vpop.f32.mrf.mxu0
          %1940 = vmatprep.mubr.bf16.mxu0 %v1353
          %1941 = vmatmul.mubr.bf16.gmra.mxu0 %v1352
          %v1942 = vpop.f32.mrf.mxu0
          %v1943 = vadd.f32 0.0, %v1942
          %v1944 = vpop.f32.mrf.mxu0
          %v1945 = vpop.f32.mrf.mxu0
          %v1946 = vadd.f32 0.0, %v1945
          %v1947 = vpop.f32.mrf.mxu0
          %1948 = vmatprep.mubr.bf16.mxu0 %v1355
          %1949 = vmatmul.mubr.bf16.gmra.mxu0 %v1354
          %v1950 = vpop.f32.mrf.mxu0
          %v1951 = vadd.f32 0.0, %v1950
          %v1952 = vpop.f32.mrf.mxu0
          %v1953 = vpop.f32.mrf.mxu0
          %v1954 = vadd.f32 0.0, %v1953
          %v1955 = vpop.f32.mrf.mxu0
          %1956 = vmatprep.mubr.bf16.mxu0 %v1357
          %1957 = vmatmul.mubr.bf16.gmra.mxu0 %v1356
          %v1958 = vpop.f32.mrf.mxu0
          %v1959 = vadd.f32 0.0, %v1958
          %v1960 = vpop.f32.mrf.mxu0
          %v1961 = vpop.f32.mrf.mxu0
          %v1962 = vadd.f32 0.0, %v1961
          %v1963 = vpop.f32.mrf.mxu0
          %1964 = vmatprep.mubr.bf16.mxu0 %v1359
          %1965 = vmatmul.mubr.bf16.gmra.mxu0 %v1358
          %v1966 = vpop.f32.mrf.mxu0
          %v1967 = vadd.f32 0.0, %v1966
          %v1968 = vpop.f32.mrf.mxu0
          %v1969 = vpop.f32.mrf.mxu0
          %v1970 = vadd.f32 0.0, %v1969
          %v1971 = vpop.f32.mrf.mxu0
          %1972 = vmatprep.mubr.bf16.mxu0 %v1361
          %1973 = vmatmul.mubr.bf16.gmra.mxu0 %v1360
          %v1974 = vpop.f32.mrf.mxu0
          %v1975 = vadd.f32 0.0, %v1974
          %v1976 = vpop.f32.mrf.mxu0
          %v1977 = vpop.f32.mrf.mxu0
          %v1978 = vadd.f32 0.0, %v1977
          %v1979 = vpop.f32.mrf.mxu0
          %1980 = vdwg.mxu0
          %v1981 = vpack.c.bf16 %v1922, %v1919
          %v1982 = vpack.c.bf16 %v1930, %v1927
          %v1983 = vpack.c.bf16 %v1938, %v1935
          %v1984 = vpack.c.bf16 %v1946, %v1943
          %v1985 = vpack.c.bf16 %v1954, %v1951
          %v1986 = vpack.c.bf16 %v1962, %v1959
          %v1987 = vpack.c.bf16 %v1970, %v1967
          %v1988 = vpack.c.bf16 %v1978, %v1975
          %v1989 = vld [vmem:[#allocation12] sm:$0xf]
          %v1990 = vld [vmem:[#allocation12 + $0x4] sm:$0xf]
          %v1991 = vld [vmem:[#allocation12 + $0x8] sm:$0xf]
          %v1992 = vld [vmem:[#allocation12 + $0xc] sm:$0xf]
          %v1993 = vld [vmem:[#allocation12 + $0x10] sm:$0xf]
          %v1994 = vld [vmem:[#allocation12 + $0x14] sm:$0xf]
          %v1995 = vld [vmem:[#allocation12 + $0x18] sm:$0xf]
          %v1996 = vld [vmem:[#allocation12 + $0x1c] sm:$0xf]
          %v1997 = vld [vmem:[#allocation12 + $0x20] sm:$0xf]
          %v1998 = vld [vmem:[#allocation12 + $0x24] sm:$0xf]
          %v1999 = vld [vmem:[#allocation12 + $0x28] sm:$0xf]
          %v2000 = vld [vmem:[#allocation12 + $0x2c] sm:$0xf]
          %v2001 = vld [vmem:[#allocation12 + $0x30] sm:$0xf]
          %v2002 = vld [vmem:[#allocation12 + $0x34] sm:$0xf]
          %v2003 = vld [vmem:[#allocation12 + $0x38] sm:$0xf]
          %v2004 = vld [vmem:[#allocation12 + $0x3c] sm:$0xf]
          %v2021 = vunpack.c.l.b16 %v1989
          %v2022 = vunpack.c.l.b16 %v1990
          %v2023 = vunpack.c.l.b16 %v1991
          %v2024 = vunpack.c.l.b16 %v1992
          %v2025 = vunpack.c.l.b16 %v1993
          %v2026 = vunpack.c.l.b16 %v1994
          %v2027 = vunpack.c.l.b16 %v1995
          %v2028 = vunpack.c.l.b16 %v1996
          %v2029 = vunpack.c.l.b16 %v1997
          %v2030 = vunpack.c.l.b16 %v1998
          %v2031 = vunpack.c.l.b16 %v1999
          %v2032 = vunpack.c.l.b16 %v2000
          %v2033 = vunpack.c.l.b16 %v2001
          %v2034 = vunpack.c.l.b16 %v2002
          %v2035 = vunpack.c.l.b16 %v2003
          %v2036 = vunpack.c.l.b16 %v2004
          %v2037 = vpack.c.b16 %v2022, %v2021
          %v2038 = vpack.c.b16 %v2024, %v2023
          %v2039 = vpack.c.b16 %v2026, %v2025
          %v2040 = vpack.c.b16 %v2028, %v2027
          %v2041 = vpack.c.b16 %v2030, %v2029
          %v2042 = vpack.c.b16 %v2032, %v2031
          %v2043 = vpack.c.b16 %v2034, %v2033
          %v2044 = vpack.c.b16 %v2036, %v2035
          %2053 = vmatprep.subr.bf16.mxu0 0
          %2054 = vmatpush1.bf16.msra.mxu0 %v2044
          %2055 = vmatprep.subr.bf16.mxu0 0
          %2056 = vmatpush1.bf16.msra.mxu0 %v2043
          %2057 = vmatprep.subr.bf16.mxu0 0
          %2058 = vmatpush1.bf16.msra.mxu0 %v2042
          %2059 = vmatprep.subr.bf16.mxu0 0
          %2060 = vmatpush1.bf16.msra.mxu0 %v2041
          %2061 = vmatprep.subr.bf16.mxu0 0
          %2062 = vmatpush1.bf16.msra.mxu0 %v2040
          %2063 = vmatprep.subr.bf16.mxu0 0
          %2064 = vmatpush1.bf16.msra.mxu0 %v2039
          %2065 = vmatprep.subr.bf16.mxu0 0
          %2066 = vmatpush1.bf16.msra.mxu0 %v2038
          %2067 = vmatprep.subr.bf16.mxu0 0
          %2068 = vmatpush1.bf16.msra.mxu0 %v2037
          %2069 = vmatprep.subr.bf16.mxu0 0
          %2070 = vmatpush2.bf16.msra.mxu0 0
          %2071 = vmatprep.subr.bf16.mxu0 0
          %2072 = vmatpush2.bf16.msra.mxu0 0
          %2073 = vmatprep.subr.bf16.mxu0 0
          %2074 = vmatpush2.bf16.msra.mxu0 0
          %2075 = vmatprep.subr.bf16.mxu0 0
          %2076 = vmatpush2.bf16.msra.mxu0 0
          %2077 = vmatprep.subr.bf16.mxu0 0
          %2078 = vmatpush2.bf16.msra.mxu0 0
          %2079 = vmatprep.subr.bf16.mxu0 0
          %2080 = vmatpush2.bf16.msra.mxu0 0
          %2081 = vmatprep.subr.bf16.mxu0 0
          %2082 = vmatpush2.bf16.msra.mxu0 0
          %2083 = vmatprep.subr.bf16.mxu0 0
          %2084 = vmatpush2.bf16.msra.mxu0 0
          %2085 = vmatprep.mubr.bf16.mxu0 0
          %2086 = vmatmul.mubr.bf16.gmra.mxu0 %v1981
          %v2087 = vpop.f32.mrf.mxu0
          %v2088 = vadd.f32 0.0, %v2087
          %v2089 = vpop.f32.mrf.mxu0
          %v2090 = vpop.f32.mrf.mxu0
          %v2091 = vadd.f32 0.0, %v2090
          %v2092 = vpop.f32.mrf.mxu0
          %2093 = vmatprep.mubr.bf16.mxu0 0
          %2094 = vmatmul.mubr.bf16.gmra.mxu0 %v1982
          %v2095 = vpop.f32.mrf.mxu0
          %v2096 = vadd.f32 0.0, %v2095
          %v2097 = vpop.f32.mrf.mxu0
          %v2098 = vpop.f32.mrf.mxu0
          %v2099 = vadd.f32 0.0, %v2098
          %v2100 = vpop.f32.mrf.mxu0
          %2101 = vmatprep.mubr.bf16.mxu0 0
          %2102 = vmatmul.mubr.bf16.gmra.mxu0 %v1983
          %v2103 = vpop.f32.mrf.mxu0
          %v2104 = vadd.f32 0.0, %v2103
          %v2105 = vpop.f32.mrf.mxu0
          %v2106 = vpop.f32.mrf.mxu0
          %v2107 = vadd.f32 0.0, %v2106
          %v2108 = vpop.f32.mrf.mxu0
          %2109 = vmatprep.mubr.bf16.mxu0 0
          %2110 = vmatmul.mubr.bf16.gmra.mxu0 %v1984
          %v2111 = vpop.f32.mrf.mxu0
          %v2112 = vadd.f32 0.0, %v2111
          %v2113 = vpop.f32.mrf.mxu0
          %v2114 = vpop.f32.mrf.mxu0
          %v2115 = vadd.f32 0.0, %v2114
          %v2116 = vpop.f32.mrf.mxu0
          %2117 = vmatprep.mubr.bf16.mxu0 0
          %2118 = vmatmul.mubr.bf16.gmra.mxu0 %v1985
          %v2119 = vpop.f32.mrf.mxu0
          %v2120 = vadd.f32 0.0, %v2119
          %v2121 = vpop.f32.mrf.mxu0
          %v2122 = vpop.f32.mrf.mxu0
          %v2123 = vadd.f32 0.0, %v2122
          %v2124 = vpop.f32.mrf.mxu0
          %2125 = vmatprep.mubr.bf16.mxu0 0
          %2126 = vmatmul.mubr.bf16.gmra.mxu0 %v1986
          %v2127 = vpop.f32.mrf.mxu0
          %v2128 = vadd.f32 0.0, %v2127
          %v2129 = vpop.f32.mrf.mxu0
          %v2130 = vpop.f32.mrf.mxu0
          %v2131 = vadd.f32 0.0, %v2130
          %v2132 = vpop.f32.mrf.mxu0
          %2133 = vmatprep.mubr.bf16.mxu0 0
          %2134 = vmatmul.mubr.bf16.gmra.mxu0 %v1987
          %v2135 = vpop.f32.mrf.mxu0
          %v2136 = vadd.f32 0.0, %v2135
          %v2137 = vpop.f32.mrf.mxu0
          %v2138 = vpop.f32.mrf.mxu0
          %v2139 = vadd.f32 0.0, %v2138
          %v2140 = vpop.f32.mrf.mxu0
          %2141 = vmatprep.mubr.bf16.mxu0 0
          %2142 = vmatmul.mubr.bf16.gmra.mxu0 %v1988
          %v2143 = vpop.f32.mrf.mxu0
          %v2144 = vadd.f32 0.0, %v2143
          %v2145 = vpop.f32.mrf.mxu0
          %v2146 = vpop.f32.mrf.mxu0
          %v2147 = vadd.f32 0.0, %v2146
          %v2148 = vpop.f32.mrf.mxu0
          %2149 = vdwg.mxu0
          %2150 = vst [vmem:[%s482] sm:$0xff] %v2088
          %2151 = vst [vmem:[%s482 + $0x8] sm:$0xff] %v2091
          %2152 = vst [vmem:[%s482 + $0x10] sm:$0xff] %v2096
          %2153 = vst [vmem:[%s482 + $0x18] sm:$0xff] %v2099
          %2154 = vst [vmem:[%s482 + $0x20] sm:$0xff] %v2104
          %2155 = vst [vmem:[%s482 + $0x28] sm:$0xff] %v2107
          %2156 = vst [vmem:[%s482 + $0x30] sm:$0xff] %v2112
          %2157 = vst [vmem:[%s482 + $0x38] sm:$0xff] %v2115
          %2158 = vst [vmem:[%s482 + $0x40] sm:$0xff] %v2120
          %2159 = vst [vmem:[%s482 + $0x48] sm:$0xff] %v2123
          %2160 = vst [vmem:[%s482 + $0x50] sm:$0xff] %v2128
          %2161 = vst [vmem:[%s482 + $0x58] sm:$0xff] %v2131
          %2162 = vst [vmem:[%s482 + $0x60] sm:$0xff] %v2136
          %2163 = vst [vmem:[%s482 + $0x68] sm:$0xff] %v2139
          %2164 = vst [vmem:[%s482 + $0x70] sm:$0xff] %v2144
          %2165 = vst [vmem:[%s482 + $0x78] sm:$0xff] %v2147
        $region84: #{tpu_custom_call.1} parent=47 // pred_fallthru
          _
        %s2166 = sand.u32 %s216, 1
        %s2167 = scalar_lea.sflag [#allocation6], %s2166
        %s2168 = sand.u32 %s216, 1
        %s2169 = smul.addr %s2168, 128
        %s2170 = scalar_lea.vmem [#allocation16], %s2169
        %s2171 = sand.u32 %s242, 1
        %s2172 = scalar_lea.sflag [#allocation18], %s2171
        %s2173 = sand.u32 %s242, 1
        %s2174 = smul.addr %s2173, 128
        %s2175 = scalar_lea.vmem [#allocation17], %s2174
        // Predicated region
        $region85: #{tpu_custom_call.1} parent=47 // pred_check
          %p2176 = pneg %p226
        $region86: #{tpu_custom_call.1} parent=47 // pred_check_branch
          %2178 = sbr.rel (%p2176) target = $region88
        $region87: #{tpu_custom_call.1} parent=47 // pred_region
          %s2179 = smul.u32 16, %s39
          %s2181 = ssub.s32 2048, 2048
          %2182 = vsyncadd %s2167, %s2181
          %s2183 = smul.addr %s2179, 128
          %s2184 = scalar_lea.hbm %s7, %s2183
          %s2185 = sshll.u32 %s2170, 4
          %s2186 = int_to_ptr.vmem [resolvable:$true] %s2185
          %2191 = dma.vmem_to_hbm [thread:$0]  %s2186, 2048, %s2184, %s2167, 128, 128, 8
        $region88: #{tpu_custom_call.1} parent=47 // pred_fallthru
          _
        // Predicated region
        $region89: #{tpu_custom_call.1} parent=47 // pred_check
          %p2192 = pneg %p252
        $region90: #{tpu_custom_call.1} parent=47 // pred_check_branch
          %2194 = sbr.rel (%p2192) target = $region92
        $region91: #{tpu_custom_call.1} parent=47 // pred_region
          %s2195 = smul.u32 16, %s39
          %s2197 = ssub.s32 2048, 2048
          %2198 = vsyncadd %s2172, %s2197
          %s2199 = smul.addr %s2195, 128
          %s2200 = scalar_lea.hbm %s8, %s2199
          %s2201 = sshll.u32 %s2175, 4
          %s2202 = int_to_ptr.vmem [resolvable:$true] %s2201
          %2207 = dma.vmem_to_hbm [thread:$0]  %s2202, 2048, %s2200, %s2172, 128, 128, 8
        $region92: #{tpu_custom_call.1} parent=47 // pred_fallthru
          _
      $region48: #{tpu_custom_call.1} parent=5 // pred_fallthru
        _
      %p2208 = scmp.le.s32.totalorder 2, %s29
      // Predicated region
      $region93: #{tpu_custom_call.1} parent=5 // pred_check
        %p2209 = pneg %p2208
      $region94: #{tpu_custom_call.1} parent=5 // pred_check_branch
        %2211 = sbr.rel (%p2209) target = $region96
      $region95: #{tpu_custom_call.1} parent=5 // pred_region
        %s2212 = ssub.s32 %s29, 2
        // Predicated region
        $region97: #{tpu_custom_call.1} parent=95 // pred_check
          %p2213 = pneg %p232
        $region98: #{tpu_custom_call.1} parent=95 // pred_check_branch
          %2215 = sbr.rel (%p2213) target = $region100
        $region99: #{tpu_custom_call.1} parent=95 // pred_region
          %s2216 = sand.u32 %s217, 1
          %s2217 = scalar_lea.sflag [#allocation6], %s2216
          %s2218 = sand.u32 %s217, 1
          %s2219 = smul.addr %s2218, 128
          %s2220 = scalar_lea.vmem [#allocation16], %s2219
          %2221 = dma.done %s2217, 2048
        $region100: #{tpu_custom_call.1} parent=95 // pred_fallthru
          _
        // Predicated region
        $region101: #{tpu_custom_call.1} parent=95 // pred_check
          %p2222 = pneg %p258
        $region102: #{tpu_custom_call.1} parent=95 // pred_check_branch
          %2224 = sbr.rel (%p2222) target = $region104
        $region103: #{tpu_custom_call.1} parent=95 // pred_region
          %s2225 = sand.u32 %s243, 1
          %s2226 = scalar_lea.sflag [#allocation18], %s2225
          %s2227 = sand.u32 %s243, 1
          %s2228 = smul.addr %s2227, 128
          %s2229 = scalar_lea.vmem [#allocation17], %s2228
          %2230 = dma.done %s2226, 2048
        $region104: #{tpu_custom_call.1} parent=95 // pred_fallthru
          _
      $region96: #{tpu_custom_call.1} parent=5 // pred_fallthru
        _
    $region6: #{tpu_custom_call.1} parent=1 // loop_footer
      %s33 = sadd.s32 1, %s29
    $region7: #{tpu_custom_call.1} parent=1 // loop_footer_branch
      %28 = sbr.rel target = $region3
    $region8: #{tpu_custom_call.1} parent=1 // loop_exit
      _
    %2231 = vsyncpa [#allocation5], 1
    %s2232 = scalar_lea.sflag [#allocation5], 1
    %2233 = vsyncpa %s2232, 1
    %2234 = vsyncpa [#allocation8], 1
    %2235 = vsyncpa [#allocation11], 1
    %2236 = vsyncpa [#allocation14], 1
    %s2237 = scalar_lea.sflag [#allocation14], 1
    %2238 = vsyncpa %s2237, 1
    %2239 = vsyncpa [#allocation6], 1
    %s2240 = scalar_lea.sflag [#allocation6], 1
    %2241 = vsyncpa %s2240, 1
    %2242 = vsyncpa [#allocation18], 1
    %s2243 = scalar_lea.sflag [#allocation18], 1
    %2244 = vsyncpa %s2243, 1

</llo_original>
